<compile_context>
chip_gen: v6e
topology: v6e:2x2x1
jax: 0.10.0
libtpu: 0.0.40
codegen_flags: <defaults>
</compile_context>

<pallas_src>
import jax
import jax.numpy as jnp
from jax.experimental import pallas as pl
from jax.experimental.pallas import tpu as pltpu


# ----------------------------------------------------------------------------
# Pallas kernel: fused 3-layer MLP for one M-tile of the batch
# ----------------------------------------------------------------------------
def _mlp_kernel(x_ref, w1_ref, b1_ref, w2_ref, b2_ref, w3_ref, b3_ref, o_ref):
    # fc1 + relu  (bf16 operands, f32 accumulate)
    h = jnp.dot(x_ref[...], w1_ref[...], preferred_element_type=jnp.float32)
    h = jnp.maximum(h + b1_ref[...], 0.0)

    # dropout: eval-mode identity (see TODO above)

    # fc2 + relu
    h = jnp.dot(h.astype(jnp.bfloat16), w2_ref[...],
                preferred_element_type=jnp.float32)
    h = jnp.maximum(h + b2_ref[...], 0.0)

    # fc3 (logits)
    o = jnp.dot(h.astype(jnp.bfloat16), w3_ref[...],
                preferred_element_type=jnp.float32)
    o_ref[...] = (o + b3_ref[...]).astype(o_ref.dtype)


def _round_up(x, m):
    return ((x + m - 1) // m) * m


def mlp_mnist_forward(x_nchw, params):
    """x_nchw: (N, 1, 28, 28) float32 -> logits (N, 10) float32."""
    n = x_nchw.shape[0]
    d_in, d_h1, d_h2, d_out = 784, 512, 256, 10

    # flatten (PyTorch nn.Flatten over (N,1,28,28) -> (N,784)), cast to bf16
    x = x_nchw.reshape(n, d_in).astype(jnp.bfloat16)

    # M tiling: up to 256 rows per tile, padded to a multiple of the tile.
    tm = min(256, _round_up(n, 8))
    m_pad = _round_up(n, tm)
    if m_pad != n:
        x = jnp.pad(x, ((0, m_pad - n), (0, 0)))
    grid_m = m_pad // tm

    w1 = params["fc1_w"].astype(jnp.bfloat16)
    w2 = params["fc2_w"].astype(jnp.bfloat16)
    w3 = params["fc3_w"].astype(jnp.bfloat16)
    b1 = params["fc1_b"].reshape(1, d_h1).astype(jnp.float32)
    b2 = params["fc2_b"].reshape(1, d_h2).astype(jnp.float32)
    b3 = params["fc3_b"].reshape(1, d_out).astype(jnp.float32)

    out = pl.pallas_call(
        _mlp_kernel,
        out_shape=jax.ShapeDtypeStruct((m_pad, d_out), jnp.float32),
        grid=(grid_m,),
        in_specs=[
            pl.BlockSpec((tm, d_in), lambda i: (i, 0)),      # x tile (streams)
            pl.BlockSpec((d_in, d_h1), lambda i: (0, 0)),    # w1 (resident)
            pl.BlockSpec((1, d_h1), lambda i: (0, 0)),       # b1
            pl.BlockSpec((d_h1, d_h2), lambda i: (0, 0)),    # w2 (resident)
            pl.BlockSpec((1, d_h2), lambda i: (0, 0)),       # b2
            pl.BlockSpec((d_h2, d_out), lambda i: (0, 0)),   # w3 (resident)
            pl.BlockSpec((1, d_out), lambda i: (0, 0)),      # b3
        ],
        out_specs=pl.BlockSpec((tm, d_out), lambda i: (i, 0)),
        compiler_params=pltpu.CompilerParams(
            dimension_semantics=("parallel",),
            vmem_limit_bytes=32 * 1024 * 1024,
        ),
    )(x, w1, b1, w2, b2, w3, b3)

    return out[:n]


# ----------------------------------------------------------------------------
# Parameter init (PyTorch nn.Linear default: U(-1/sqrt(fan_in), 1/sqrt(fan_in)))
# Weights stored as (in, out) to avoid per-call transposes.
# ----------------------------------------------------------------------------
def init_params(key):
    ks = jax.random.split(key, 6)

    def uniform(k, shape, fan_in):
        bound = 1.0 / jnp.sqrt(float(fan_in))
        return jax.random.uniform(k, shape, jnp.float32, -bound, bound)

    return {
        "fc1_w": uniform(ks[0], (784, 512), 784),
        "fc1_b": uniform(ks[1], (512,), 784),
        "fc2_w": uniform(ks[2], (512, 256), 512),
        "fc2_b": uniform(ks[3], (256,), 512),
        "fc3_w": uniform(ks[4], (256, 10), 256),
        "fc3_b": uniform(ks[5], (10,), 256),
    }


if __name__ == "__main__":
    key = jax.random.PRNGKey(0)
    k_x, k_p = jax.random.split(key)

    # MNIST-shaped input: fc1 requires 28*28 = 784 flattened features.
    x = jax.random.normal(k_x, (2, 1, 28, 28), jnp.float32)
    params = init_params(k_p)

    logits = jax.block_until_ready(mlp_mnist_forward(x, params))
    assert logits.shape == (2, 10) and logits.dtype == jnp.float32
    assert bool(jnp.all(jnp.isfinite(logits)))
    print("KERNEL_OK")
</pallas_src>

<mosaic_0001>
module attributes {stable_mosaic.version = 11 : i64} {
  func.func @_mlp_kernel(%arg0: i32, %arg1: memref<8x784xbf16, #tpu.memory_space<vmem>>, %arg2: memref<784x512xbf16, #tpu.memory_space<vmem>>, %arg3: memref<1x512xf32, #tpu.memory_space<vmem>>, %arg4: memref<512x256xbf16, #tpu.memory_space<vmem>>, %arg5: memref<1x256xf32, #tpu.memory_space<vmem>>, %arg6: memref<256x10xbf16, #tpu.memory_space<vmem>>, %arg7: memref<1x10xf32, #tpu.memory_space<vmem>>, %arg8: memref<8x10xf32, #tpu.memory_space<vmem>>) attributes {dimension_semantics = [#tpu.dimension_semantics<parallel>], iteration_bounds = array<i64: 1>, scalar_prefetch = 0 : i64, scratch_operands = 0 : i64, tpu.core_type = #tpu.core_type<tc>, window_params = [{transform_indices = @transform_0, window_bounds = array<i64: 8, 784>}, {pipeline_mode = #tpu.pipeline_mode<synchronous>, transform_indices = @transform_1, window_bounds = array<i64: 784, 512>}, {pipeline_mode = #tpu.pipeline_mode<synchronous>, transform_indices = @transform_2, window_bounds = array<i64: 1, 512>}, {pipeline_mode = #tpu.pipeline_mode<synchronous>, transform_indices = @transform_3, window_bounds = array<i64: 512, 256>}, {pipeline_mode = #tpu.pipeline_mode<synchronous>, transform_indices = @transform_4, window_bounds = array<i64: 1, 256>}, {pipeline_mode = #tpu.pipeline_mode<synchronous>, transform_indices = @transform_5, window_bounds = array<i64: 256, 10>}, {pipeline_mode = #tpu.pipeline_mode<synchronous>, transform_indices = @transform_6, window_bounds = array<i64: 1, 10>}, {transform_indices = @transform_7, window_bounds = array<i64: 8, 10>}]} {
    %c0 = arith.constant 0 : index
    %c0_0 = arith.constant 0 : index
    %0 = vector.load %arg1[%c0, %c0_0] : memref<8x784xbf16, #tpu.memory_space<vmem>>, vector<8x784xbf16>
    %c0_1 = arith.constant 0 : index
    %c0_2 = arith.constant 0 : index
    %1 = vector.load %arg2[%c0_1, %c0_2] : memref<784x512xbf16, #tpu.memory_space<vmem>>, vector<784x512xbf16>
    %cst = arith.constant dense<0.000000e+00> : vector<8x512xf32>
    %2 = tpu.matmul %0, %1, %cst {dimension_numbers = #tpu.dot_dimension_numbers<[1], [0], [0], [1], [0, 0, 1, 1], [], []>} : vector<8x784xbf16>, vector<784x512xbf16>, vector<8x512xf32> -> vector<8x512xf32>
    %c0_3 = arith.constant 0 : index
    %c0_4 = arith.constant 0 : index
    %3 = vector.load %arg3[%c0_3, %c0_4] : memref<1x512xf32, #tpu.memory_space<vmem>>, vector<1x512xf32>
    %4 = vector.broadcast %3 : vector<1x512xf32> to vector<8x512xf32>
    %5 = arith.addf %2, %4 : vector<8x512xf32>
    %cst_5 = arith.constant 0.000000e+00 : f32
    %6 = vector.broadcast %cst_5 : f32 to vector<8x512xf32>
    %7 = arith.maximumf %5, %6 : vector<8x512xf32>
    %8 = arith.truncf %7 : vector<8x512xf32> to vector<8x512xbf16>
    %c0_6 = arith.constant 0 : index
    %c0_7 = arith.constant 0 : index
    %9 = vector.load %arg4[%c0_6, %c0_7] : memref<512x256xbf16, #tpu.memory_space<vmem>>, vector<512x256xbf16>
    %cst_8 = arith.constant dense<0.000000e+00> : vector<8x256xf32>
    %10 = tpu.matmul %8, %9, %cst_8 {dimension_numbers = #tpu.dot_dimension_numbers<[1], [0], [0], [1], [0, 0, 1, 1], [], []>} : vector<8x512xbf16>, vector<512x256xbf16>, vector<8x256xf32> -> vector<8x256xf32>
    %c0_9 = arith.constant 0 : index
    %c0_10 = arith.constant 0 : index
    %11 = vector.load %arg5[%c0_9, %c0_10] : memref<1x256xf32, #tpu.memory_space<vmem>>, vector<1x256xf32>
    %12 = vector.broadcast %11 : vector<1x256xf32> to vector<8x256xf32>
    %13 = arith.addf %10, %12 : vector<8x256xf32>
    %cst_11 = arith.constant 0.000000e+00 : f32
    %14 = vector.broadcast %cst_11 : f32 to vector<8x256xf32>
    %15 = arith.maximumf %13, %14 : vector<8x256xf32>
    %16 = arith.truncf %15 : vector<8x256xf32> to vector<8x256xbf16>
    %c0_12 = arith.constant 0 : index
    %c0_13 = arith.constant 0 : index
    %17 = vector.load %arg6[%c0_12, %c0_13] : memref<256x10xbf16, #tpu.memory_space<vmem>>, vector<256x10xbf16>
    %cst_14 = arith.constant dense<0.000000e+00> : vector<8x10xf32>
    %18 = tpu.matmul %16, %17, %cst_14 {dimension_numbers = #tpu.dot_dimension_numbers<[1], [0], [0], [1], [0, 0, 1, 1], [], []>} : vector<8x256xbf16>, vector<256x10xbf16>, vector<8x10xf32> -> vector<8x10xf32>
    %c0_15 = arith.constant 0 : index
    %c0_16 = arith.constant 0 : index
    %19 = vector.load %arg7[%c0_15, %c0_16] : memref<1x10xf32, #tpu.memory_space<vmem>>, vector<1x10xf32>
    %20 = vector.broadcast %19 : vector<1x10xf32> to vector<8x10xf32>
    %21 = arith.addf %18, %20 : vector<8x10xf32>
    %c0_17 = arith.constant 0 : index
    %c0_18 = arith.constant 0 : index
    %22 = vector.load %arg8[%c0_17, %c0_18] : memref<8x10xf32, #tpu.memory_space<vmem>>, vector<8x10xf32>
    tpu.vector_store %arg8[%c0_17, %c0_18], %21 {strides = array<i32>} : memref<8x10xf32, #tpu.memory_space<vmem>>, vector<8x10xf32>,
    return
  }
  func.func @transform_0(%arg0: i32) -> (i32, i32) {
    %c0_i32 = arith.constant 0 : i32
    %c0_i32_0 = arith.constant 0 : i32
    return %arg0, %c0_i32 : i32, i32
  }
  func.func @transform_1(%arg0: i32) -> (i32, i32) {
    %c0_i32 = arith.constant 0 : i32
    %c0_i32_0 = arith.constant 0 : i32
    %c0_i32_1 = arith.constant 0 : i32
    return %c0_i32, %c0_i32_0 : i32, i32
  }
  func.func @transform_2(%arg0: i32) -> (i32, i32) {
    %c0_i32 = arith.constant 0 : i32
    %c0_i32_0 = arith.constant 0 : i32
    %c0_i32_1 = arith.constant 0 : i32
    return %c0_i32, %c0_i32_0 : i32, i32
  }
  func.func @transform_3(%arg0: i32) -> (i32, i32) {
    %c0_i32 = arith.constant 0 : i32
    %c0_i32_0 = arith.constant 0 : i32
    %c0_i32_1 = arith.constant 0 : i32
    return %c0_i32, %c0_i32_0 : i32, i32
  }
  func.func @transform_4(%arg0: i32) -> (i32, i32) {
    %c0_i32 = arith.constant 0 : i32
    %c0_i32_0 = arith.constant 0 : i32
    %c0_i32_1 = arith.constant 0 : i32
    return %c0_i32, %c0_i32_0 : i32, i32
  }
  func.func @transform_5(%arg0: i32) -> (i32, i32) {
    %c0_i32 = arith.constant 0 : i32
    %c0_i32_0 = arith.constant 0 : i32
    %c0_i32_1 = arith.constant 0 : i32
    return %c0_i32, %c0_i32_0 : i32, i32
  }
  func.func @transform_6(%arg0: i32) -> (i32, i32) {
    %c0_i32 = arith.constant 0 : i32
    %c0_i32_0 = arith.constant 0 : i32
    %c0_i32_1 = arith.constant 0 : i32
    return %c0_i32, %c0_i32_0 : i32, i32
  }
  func.func @transform_7(%arg0: i32) -> (i32, i32) {
    %c0_i32 = arith.constant 0 : i32
    %c0_i32_0 = arith.constant 0 : i32
    return %arg0, %c0_i32 : i32, i32
  }
}

</mosaic_0001>

<llo_original>
// kernel: tpu_custom_call.1
$region0: #{tpu_custom_call.1}
  #allocation0 [shape = 'u32[]', space=smem, size = 0x4, offset = 0x4, fixed_abs, tag = 'smem constant byte address 0x4 - core index']
  #allocation1 [shape = 'u32[144,128]{1,0:T(1,128)}', space=vmem, size = 0x12000, scoped, tag = 'internal scratch']
  %s0 = inlined_call_operand.vmem [shape: bf16[8,784], index: 0, kind: input, shape index: {}]
  %s1 = inlined_call_operand.hbm [shape: bf16[784,512], index: 1, kind: input, shape index: {}]
  %s2 = inlined_call_operand.vmem [shape: f32[1,512], index: 2, kind: input, shape index: {}]
  %s3 = inlined_call_operand.hbm [shape: bf16[512,256], index: 3, kind: input, shape index: {}]
  %s4 = inlined_call_operand.vmem [shape: f32[1,256], index: 4, kind: input, shape index: {}]
  %s5 = inlined_call_operand.vmem [shape: bf16[256,10], index: 5, kind: input, shape index: {}]
  %s6 = inlined_call_operand.vmem [shape: f32[1,10], index: 6, kind: input, shape index: {}]
  %s7 = inlined_call_operand.hbm [shape: f32[8,10], index: 7, kind: output, shape index: {}]
  %s8 = sld [smem:[#allocation0]]
  $region46: #{tpu_custom_call.1} parent=0
    _
  %s10 = ssub.s32 1, %s8
  %s11 = scalar_select 0, %s10, %s8
  $region1: #{tpu_custom_call.1} parent=0
    #allocation2 [shape = 'u8[802816]{0}', space=vmem, size = 0xc4000, scoped, tag = 'input window, operand 1, single buffered']
    #allocation3 [shape = 's32[1]{0}', space=sflag, size = 0x4, scoped, tag = 'scoped memory for tpu_custom_call.1']
    #allocation4 [shape = 's32[1]{0}', space=sflag, size = 0x4, scoped, tag = 'scoped memory for tpu_custom_call.1']
    #allocation5 [shape = 'u8[262144]{0}', space=vmem, size = 0x40000, scoped, tag = 'input window, operand 3, single buffered']
    #allocation6 [shape = 's32[1]{0}', space=sflag, size = 0x4, scoped, tag = 'scoped memory for tpu_custom_call.1']
    #allocation7 [shape = 'u8[4096]{0}', space=vmem, size = 0x1000, scoped, tag = 'output window, operand 0, single buffered']
    %12 = vsyncpa [#allocation3], 0
    %13 = vsyncpa [#allocation6], 0
    %14 = vsyncpa [#allocation4], 0
    // Predicated region
    $region2: #{tpu_custom_call.1} parent=1 // pred_check
      _
    $region3: #{tpu_custom_call.1} parent=1 // pred_check_branch
      %16 = sbr.rel (0) target = $region5
    $region4: #{tpu_custom_call.1} parent=1 // pred_region
      _
    $region5: #{tpu_custom_call.1} parent=1 // pred_fallthru
      _
    // Predicated region
    $region6: #{tpu_custom_call.1} parent=1 // pred_check
      _
    $region7: #{tpu_custom_call.1} parent=1 // pred_check_branch
      %18 = sbr.rel (0) target = $region9
    $region8: #{tpu_custom_call.1} parent=1 // pred_region
      %s20 = ssub.s32 25088, 25088
      %21 = vsyncadd [#allocation3], %s20
      %s22 = sshll.u32 [#allocation2], 4
      %s23 = int_to_ptr.vmem [resolvable:$true] %s22
      %28 = dma.hbm_to_vmem [thread:$0]  %s1, 25088, %s23, [#allocation3], 256, 256, 16
    $region9: #{tpu_custom_call.1} parent=1 // pred_fallthru
      _
    // Predicated region
    $region10: #{tpu_custom_call.1} parent=1 // pred_check
      _
    $region11: #{tpu_custom_call.1} parent=1 // pred_check_branch
      %30 = sbr.rel (0) target = $region13
    $region12: #{tpu_custom_call.1} parent=1 // pred_region
      _
    $region13: #{tpu_custom_call.1} parent=1 // pred_fallthru
      _
    // Predicated region
    $region14: #{tpu_custom_call.1} parent=1 // pred_check
      _
    $region15: #{tpu_custom_call.1} parent=1 // pred_check_branch
      %32 = sbr.rel (0) target = $region17
    $region16: #{tpu_custom_call.1} parent=1 // pred_region
      %s34 = ssub.s32 8192, 8192
      %35 = vsyncadd [#allocation6], %s34
      %s36 = sshll.u32 [#allocation5], 4
      %s37 = int_to_ptr.vmem [resolvable:$true] %s36
      %42 = dma.hbm_to_vmem [thread:$0]  %s3, 8192, %s37, [#allocation6], 128, 128, 8
    $region17: #{tpu_custom_call.1} parent=1 // pred_fallthru
      _
    // Predicated region
    $region18: #{tpu_custom_call.1} parent=1 // pred_check
      _
    $region19: #{tpu_custom_call.1} parent=1 // pred_check_branch
      %44 = sbr.rel (0) target = $region21
    $region20: #{tpu_custom_call.1} parent=1 // pred_region
      _
    $region21: #{tpu_custom_call.1} parent=1 // pred_fallthru
      _
    // Predicated region
    $region22: #{tpu_custom_call.1} parent=1 // pred_check
      _
    $region23: #{tpu_custom_call.1} parent=1 // pred_check_branch
      %46 = sbr.rel (0) target = $region25
    $region24: #{tpu_custom_call.1} parent=1 // pred_region
      _
    $region25: #{tpu_custom_call.1} parent=1 // pred_fallthru
      _
    // Predicated region
    $region26: #{tpu_custom_call.1} parent=1 // pred_check
      _
    $region27: #{tpu_custom_call.1} parent=1 // pred_check_branch
      %48 = sbr.rel (0) target = $region29
    $region28: #{tpu_custom_call.1} parent=1 // pred_region
      _
    $region29: #{tpu_custom_call.1} parent=1 // pred_fallthru
      _
    // Predicated region
    $region30: #{tpu_custom_call.1} parent=1 // pred_check
      _
    $region31: #{tpu_custom_call.1} parent=1 // pred_check_branch
      %50 = sbr.rel (0) target = $region33
    $region32: #{tpu_custom_call.1} parent=1 // pred_region
      %51 = dma.done [#allocation3], 25088
    $region33: #{tpu_custom_call.1} parent=1 // pred_fallthru
      _
    // Predicated region
    $region34: #{tpu_custom_call.1} parent=1 // pred_check
      _
    $region35: #{tpu_custom_call.1} parent=1 // pred_check_branch
      %53 = sbr.rel (0) target = $region37
    $region36: #{tpu_custom_call.1} parent=1 // pred_region
      %54 = dma.done [#allocation6], 8192
    $region37: #{tpu_custom_call.1} parent=1 // pred_fallthru
      _
    %v56 = vld [vmem:[%s0] sm:$0xff]
    %v57 = vld [vmem:[%s0 + $0x8] sm:$0xff]
    %v58 = vld [vmem:[%s0 + $0x10] sm:$0xff]
    %v59 = vld [vmem:[%s0 + $0x18] sm:$0xf]
    %v60 = vld [vmem:[#allocation2] sm:$0xff]
    %v61 = vld [vmem:[#allocation2 + $0x8] sm:$0xff]
    %v62 = vld [vmem:[#allocation2 + $0x10] sm:$0xff]
    %v63 = vld [vmem:[#allocation2 + $0x18] sm:$0xff]
    %v64 = vld [vmem:[#allocation2 + $0x20] sm:$0xff]
    %v65 = vld [vmem:[#allocation2 + $0x28] sm:$0xff]
    %v66 = vld [vmem:[#allocation2 + $0x30] sm:$0xff]
    %v67 = vld [vmem:[#allocation2 + $0x38] sm:$0xff]
    %v68 = vld [vmem:[#allocation2 + $0x40] sm:$0xff]
    %v69 = vld [vmem:[#allocation2 + $0x48] sm:$0xff]
    %v70 = vld [vmem:[#allocation2 + $0x50] sm:$0xff]
    %v71 = vld [vmem:[#allocation2 + $0x58] sm:$0xff]
    %v72 = vld [vmem:[#allocation2 + $0x60] sm:$0xff]
    %v73 = vld [vmem:[#allocation2 + $0x68] sm:$0xff]
    %v74 = vld [vmem:[#allocation2 + $0x70] sm:$0xff]
    %v75 = vld [vmem:[#allocation2 + $0x78] sm:$0xff]
    %v76 = vld [vmem:[#allocation2 + $0x80] sm:$0xff]
    %v77 = vld [vmem:[#allocation2 + $0x88] sm:$0xff]
    %v78 = vld [vmem:[#allocation2 + $0x90] sm:$0xff]
    %v79 = vld [vmem:[#allocation2 + $0x98] sm:$0xff]
    %v80 = vld [vmem:[#allocation2 + $0xa0] sm:$0xff]
    %v81 = vld [vmem:[#allocation2 + $0xa8] sm:$0xff]
    %v82 = vld [vmem:[#allocation2 + $0xb0] sm:$0xff]
    %v83 = vld [vmem:[#allocation2 + $0xb8] sm:$0xff]
    %v84 = vld [vmem:[#allocation2 + $0xc0] sm:$0xff]
    %v85 = vld [vmem:[#allocation2 + $0xc8] sm:$0xff]
    %v86 = vld [vmem:[#allocation2 + $0xd0] sm:$0xff]
    %v87 = vld [vmem:[#allocation2 + $0xd8] sm:$0xff]
    %v88 = vld [vmem:[#allocation2 + $0xe0] sm:$0xff]
    %v89 = vld [vmem:[#allocation2 + $0xe8] sm:$0xff]
    %v90 = vld [vmem:[#allocation2 + $0xf0] sm:$0xff]
    %v91 = vld [vmem:[#allocation2 + $0xf8] sm:$0xff]
    %v92 = vld [vmem:[#allocation2 + $0x100] sm:$0xff]
    %v93 = vld [vmem:[#allocation2 + $0x108] sm:$0xff]
    %v94 = vld [vmem:[#allocation2 + $0x110] sm:$0xff]
    %v95 = vld [vmem:[#allocation2 + $0x118] sm:$0xff]
    %v96 = vld [vmem:[#allocation2 + $0x120] sm:$0xff]
    %v97 = vld [vmem:[#allocation2 + $0x128] sm:$0xff]
    %v98 = vld [vmem:[#allocation2 + $0x130] sm:$0xff]
    %v99 = vld [vmem:[#allocation2 + $0x138] sm:$0xff]
    %v100 = vld [vmem:[#allocation2 + $0x140] sm:$0xff]
    %v101 = vld [vmem:[#allocation2 + $0x148] sm:$0xff]
    %v102 = vld [vmem:[#allocation2 + $0x150] sm:$0xff]
    %v103 = vld [vmem:[#allocation2 + $0x158] sm:$0xff]
    %v104 = vld [vmem:[#allocation2 + $0x160] sm:$0xff]
    %v105 = vld [vmem:[#allocation2 + $0x168] sm:$0xff]
    %v106 = vld [vmem:[#allocation2 + $0x170] sm:$0xff]
    %v107 = vld [vmem:[#allocation2 + $0x178] sm:$0xff]
    %v108 = vld [vmem:[#allocation2 + $0x180] sm:$0xff]
    %v109 = vld [vmem:[#allocation2 + $0x188] sm:$0xff]
    %v110 = vld [vmem:[#allocation2 + $0x190] sm:$0xff]
    %v111 = vld [vmem:[#allocation2 + $0x198] sm:$0xff]
    %v112 = vld [vmem:[#allocation2 + $0x1a0] sm:$0xff]
    %v113 = vld [vmem:[#allocation2 + $0x1a8] sm:$0xff]
    %v114 = vld [vmem:[#allocation2 + $0x1b0] sm:$0xff]
    %v115 = vld [vmem:[#allocation2 + $0x1b8] sm:$0xff]
    %v116 = vld [vmem:[#allocation2 + $0x1c0] sm:$0xff]
    %v117 = vld [vmem:[#allocation2 + $0x1c8] sm:$0xff]
    %v118 = vld [vmem:[#allocation2 + $0x1d0] sm:$0xff]
    %v119 = vld [vmem:[#allocation2 + $0x1d8] sm:$0xff]
    %v120 = vld [vmem:[#allocation2 + $0x1e0] sm:$0xff]
    %v121 = vld [vmem:[#allocation2 + $0x1e8] sm:$0xff]
    %v122 = vld [vmem:[#allocation2 + $0x1f0] sm:$0xff]
    %v123 = vld [vmem:[#allocation2 + $0x1f8] sm:$0xff]
    %v124 = vld [vmem:[#allocation2 + $0x200] sm:$0xff]
    %v125 = vld [vmem:[#allocation2 + $0x208] sm:$0xff]
    %v126 = vld [vmem:[#allocation2 + $0x210] sm:$0xff]
    %v127 = vld [vmem:[#allocation2 + $0x218] sm:$0xff]
    %v128 = vld [vmem:[#allocation2 + $0x220] sm:$0xff]
    %v129 = vld [vmem:[#allocation2 + $0x228] sm:$0xff]
    %v130 = vld [vmem:[#allocation2 + $0x230] sm:$0xff]
    %v131 = vld [vmem:[#allocation2 + $0x238] sm:$0xff]
    %v132 = vld [vmem:[#allocation2 + $0x240] sm:$0xff]
    %v133 = vld [vmem:[#allocation2 + $0x248] sm:$0xff]
    %v134 = vld [vmem:[#allocation2 + $0x250] sm:$0xff]
    %v135 = vld [vmem:[#allocation2 + $0x258] sm:$0xff]
    %v136 = vld [vmem:[#allocation2 + $0x260] sm:$0xff]
    %v137 = vld [vmem:[#allocation2 + $0x268] sm:$0xff]
    %v138 = vld [vmem:[#allocation2 + $0x270] sm:$0xff]
    %v139 = vld [vmem:[#allocation2 + $0x278] sm:$0xff]
    %v140 = vld [vmem:[#allocation2 + $0x280] sm:$0xff]
    %v141 = vld [vmem:[#allocation2 + $0x288] sm:$0xff]
    %v142 = vld [vmem:[#allocation2 + $0x290] sm:$0xff]
    %v143 = vld [vmem:[#allocation2 + $0x298] sm:$0xff]
    %v144 = vld [vmem:[#allocation2 + $0x2a0] sm:$0xff]
    %v145 = vld [vmem:[#allocation2 + $0x2a8] sm:$0xff]
    %v146 = vld [vmem:[#allocation2 + $0x2b0] sm:$0xff]
    %v147 = vld [vmem:[#allocation2 + $0x2b8] sm:$0xff]
    %v148 = vld [vmem:[#allocation2 + $0x2c0] sm:$0xff]
    %v149 = vld [vmem:[#allocation2 + $0x2c8] sm:$0xff]
    %v150 = vld [vmem:[#allocation2 + $0x2d0] sm:$0xff]
    %v151 = vld [vmem:[#allocation2 + $0x2d8] sm:$0xff]
    %v152 = vld [vmem:[#allocation2 + $0x2e0] sm:$0xff]
    %v153 = vld [vmem:[#allocation2 + $0x2e8] sm:$0xff]
    %v154 = vld [vmem:[#allocation2 + $0x2f0] sm:$0xff]
    %v155 = vld [vmem:[#allocation2 + $0x2f8] sm:$0xff]
    %v156 = vld [vmem:[#allocation2 + $0x300] sm:$0xff]
    %v157 = vld [vmem:[#allocation2 + $0x308] sm:$0xff]
    %v158 = vld [vmem:[#allocation2 + $0x310] sm:$0xff]
    %v159 = vld [vmem:[#allocation2 + $0x318] sm:$0xff]
    %v160 = vld [vmem:[#allocation2 + $0x320] sm:$0xff]
    %v161 = vld [vmem:[#allocation2 + $0x328] sm:$0xff]
    %v162 = vld [vmem:[#allocation2 + $0x330] sm:$0xff]
    %v163 = vld [vmem:[#allocation2 + $0x338] sm:$0xff]
    %v164 = vld [vmem:[#allocation2 + $0x340] sm:$0xff]
    %v165 = vld [vmem:[#allocation2 + $0x348] sm:$0xff]
    %v166 = vld [vmem:[#allocation2 + $0x350] sm:$0xff]
    %v167 = vld [vmem:[#allocation2 + $0x358] sm:$0xff]
    %v168 = vld [vmem:[#allocation2 + $0x360] sm:$0xff]
    %v169 = vld [vmem:[#allocation2 + $0x368] sm:$0xff]
    %v170 = vld [vmem:[#allocation2 + $0x370] sm:$0xff]
    %v171 = vld [vmem:[#allocation2 + $0x378] sm:$0xff]
    %v172 = vld [vmem:[#allocation2 + $0x380] sm:$0xff]
    %v173 = vld [vmem:[#allocation2 + $0x388] sm:$0xff]
    %v174 = vld [vmem:[#allocation2 + $0x390] sm:$0xff]
    %v175 = vld [vmem:[#allocation2 + $0x398] sm:$0xff]
    %v176 = vld [vmem:[#allocation2 + $0x3a0] sm:$0xff]
    %v177 = vld [vmem:[#allocation2 + $0x3a8] sm:$0xff]
    %v178 = vld [vmem:[#allocation2 + $0x3b0] sm:$0xff]
    %v179 = vld [vmem:[#allocation2 + $0x3b8] sm:$0xff]
    %v180 = vld [vmem:[#allocation2 + $0x3c0] sm:$0xff]
    %v181 = vld [vmem:[#allocation2 + $0x3c8] sm:$0xff]
    %v182 = vld [vmem:[#allocation2 + $0x3d0] sm:$0xff]
    %v183 = vld [vmem:[#allocation2 + $0x3d8] sm:$0xff]
    %v184 = vld [vmem:[#allocation2 + $0x3e0] sm:$0xff]
    %v185 = vld [vmem:[#allocation2 + $0x3e8] sm:$0xff]
    %v186 = vld [vmem:[#allocation2 + $0x3f0] sm:$0xff]
    %v187 = vld [vmem:[#allocation2 + $0x3f8] sm:$0xff]
    %v188 = vld [vmem:[#allocation2 + $0x400] sm:$0xff]
    %v189 = vld [vmem:[#allocation2 + $0x408] sm:$0xff]
    %v190 = vld [vmem:[#allocation2 + $0x410] sm:$0xff]
    %v191 = vld [vmem:[#allocation2 + $0x418] sm:$0xff]
    %v192 = vld [vmem:[#allocation2 + $0x420] sm:$0xff]
    %v193 = vld [vmem:[#allocation2 + $0x428] sm:$0xff]
    %v194 = vld [vmem:[#allocation2 + $0x430] sm:$0xff]
    %v195 = vld [vmem:[#allocation2 + $0x438] sm:$0xff]
    %v196 = vld [vmem:[#allocation2 + $0x440] sm:$0xff]
    %v197 = vld [vmem:[#allocation2 + $0x448] sm:$0xff]
    %v198 = vld [vmem:[#allocation2 + $0x450] sm:$0xff]
    %v199 = vld [vmem:[#allocation2 + $0x458] sm:$0xff]
    %v200 = vld [vmem:[#allocation2 + $0x460] sm:$0xff]
    %v201 = vld [vmem:[#allocation2 + $0x468] sm:$0xff]
    %v202 = vld [vmem:[#allocation2 + $0x470] sm:$0xff]
    %v203 = vld [vmem:[#allocation2 + $0x478] sm:$0xff]
    %v204 = vld [vmem:[#allocation2 + $0x480] sm:$0xff]
    %v205 = vld [vmem:[#allocation2 + $0x488] sm:$0xff]
    %v206 = vld [vmem:[#allocation2 + $0x490] sm:$0xff]
    %v207 = vld [vmem:[#allocation2 + $0x498] sm:$0xff]
    %v208 = vld [vmem:[#allocation2 + $0x4a0] sm:$0xff]
    %v209 = vld [vmem:[#allocation2 + $0x4a8] sm:$0xff]
    %v210 = vld [vmem:[#allocation2 + $0x4b0] sm:$0xff]
    %v211 = vld [vmem:[#allocation2 + $0x4b8] sm:$0xff]
    %v212 = vld [vmem:[#allocation2 + $0x4c0] sm:$0xff]
    %v213 = vld [vmem:[#allocation2 + $0x4c8] sm:$0xff]
    %v214 = vld [vmem:[#allocation2 + $0x4d0] sm:$0xff]
    %v215 = vld [vmem:[#allocation2 + $0x4d8] sm:$0xff]
    %v216 = vld [vmem:[#allocation2 + $0x4e0] sm:$0xff]
    %v217 = vld [vmem:[#allocation2 + $0x4e8] sm:$0xff]
    %v218 = vld [vmem:[#allocation2 + $0x4f0] sm:$0xff]
    %v219 = vld [vmem:[#allocation2 + $0x4f8] sm:$0xff]
    %v220 = vld [vmem:[#allocation2 + $0x500] sm:$0xff]
    %v221 = vld [vmem:[#allocation2 + $0x508] sm:$0xff]
    %v222 = vld [vmem:[#allocation2 + $0x510] sm:$0xff]
    %v223 = vld [vmem:[#allocation2 + $0x518] sm:$0xff]
    %v224 = vld [vmem:[#allocation2 + $0x520] sm:$0xff]
    %v225 = vld [vmem:[#allocation2 + $0x528] sm:$0xff]
    %v226 = vld [vmem:[#allocation2 + $0x530] sm:$0xff]
    %v227 = vld [vmem:[#allocation2 + $0x538] sm:$0xff]
    %v228 = vld [vmem:[#allocation2 + $0x540] sm:$0xff]
    %v229 = vld [vmem:[#allocation2 + $0x548] sm:$0xff]
    %v230 = vld [vmem:[#allocation2 + $0x550] sm:$0xff]
    %v231 = vld [vmem:[#allocation2 + $0x558] sm:$0xff]
    %v232 = vld [vmem:[#allocation2 + $0x560] sm:$0xff]
    %v233 = vld [vmem:[#allocation2 + $0x568] sm:$0xff]
    %v234 = vld [vmem:[#allocation2 + $0x570] sm:$0xff]
    %v235 = vld [vmem:[#allocation2 + $0x578] sm:$0xff]
    %v236 = vld [vmem:[#allocation2 + $0x580] sm:$0xff]
    %v237 = vld [vmem:[#allocation2 + $0x588] sm:$0xff]
    %v238 = vld [vmem:[#allocation2 + $0x590] sm:$0xff]
    %v239 = vld [vmem:[#allocation2 + $0x598] sm:$0xff]
    %v240 = vld [vmem:[#allocation2 + $0x5a0] sm:$0xff]
    %v241 = vld [vmem:[#allocation2 + $0x5a8] sm:$0xff]
    %v242 = vld [vmem:[#allocation2 + $0x5b0] sm:$0xff]
    %v243 = vld [vmem:[#allocation2 + $0x5b8] sm:$0xff]
    %v244 = vld [vmem:[#allocation2 + $0x5c0] sm:$0xff]
    %v245 = vld [vmem:[#allocation2 + $0x5c8] sm:$0xff]
    %v246 = vld [vmem:[#allocation2 + $0x5d0] sm:$0xff]
    %v247 = vld [vmem:[#allocation2 + $0x5d8] sm:$0xff]
    %v248 = vld [vmem:[#allocation2 + $0x5e0] sm:$0xff]
    %v249 = vld [vmem:[#allocation2 + $0x5e8] sm:$0xff]
    %v250 = vld [vmem:[#allocation2 + $0x5f0] sm:$0xff]
    %v251 = vld [vmem:[#allocation2 + $0x5f8] sm:$0xff]
    %v252 = vld [vmem:[#allocation2 + $0x600] sm:$0xff]
    %v253 = vld [vmem:[#allocation2 + $0x608] sm:$0xff]
    %v254 = vld [vmem:[#allocation2 + $0x610] sm:$0xff]
    %v255 = vld [vmem:[#allocation2 + $0x618] sm:$0xff]
    %v256 = vld [vmem:[%s2] sm:$0xf]
    %v258 = vlaneseq
    %v259 = vshrl.u32 %v258, 7
    %v260 = vsub.s32 0, %v259
    %v261 = vrot.slane %v256, %v260
    %v262 = vlaneseq
    %v263 = vshrl.u32 %v262, 7
    %v264 = vsub.s32 1, %v263
    %v265 = vrot.slane %v256, %v264
    %v266 = vlaneseq
    %v267 = vshrl.u32 %v266, 7
    %v268 = vsub.s32 2, %v267
    %v269 = vrot.slane %v256, %v268
    %v270 = vlaneseq
    %v271 = vshrl.u32 %v270, 7
    %v272 = vsub.s32 3, %v271
    %v273 = vrot.slane %v256, %v272
    %v282 = vunpack.c.l.b16 %v56
    %v283 = vunpack.c.h.b16 %v56
    %v284 = vunpack.c.l.b16 %v57
    %v285 = vunpack.c.h.b16 %v57
    %v286 = vunpack.c.l.b16 %v58
    %v287 = vunpack.c.h.b16 %v58
    %v288 = vunpack.c.l.b16 %v59
    %v289 = vpack.c.b16 %v282, %v282
    %v290 = vpack.c.b16 %v283, %v283
    %v291 = vpack.c.b16 %v284, %v284
    %v292 = vpack.c.b16 %v285, %v285
    %v293 = vpack.c.b16 %v286, %v286
    %v294 = vpack.c.b16 %v287, %v287
    %v295 = vpack.c.b16 %v288, %v288
    %v498 = vunpack.c.l.b16 %v60
    %v499 = vunpack.c.h.b16 %v60
    %v500 = vunpack.c.l.b16 %v61
    %v501 = vunpack.c.h.b16 %v61
    %v502 = vunpack.c.l.b16 %v62
    %v503 = vunpack.c.h.b16 %v62
    %v504 = vunpack.c.l.b16 %v63
    %v505 = vunpack.c.h.b16 %v63
    %v506 = vunpack.c.l.b16 %v64
    %v507 = vunpack.c.h.b16 %v64
    %v508 = vunpack.c.l.b16 %v65
    %v509 = vunpack.c.h.b16 %v65
    %v510 = vunpack.c.l.b16 %v66
    %v511 = vunpack.c.h.b16 %v66
    %v512 = vunpack.c.l.b16 %v67
    %v513 = vunpack.c.h.b16 %v67
    %v514 = vunpack.c.l.b16 %v68
    %v515 = vunpack.c.h.b16 %v68
    %v516 = vunpack.c.l.b16 %v69
    %v517 = vunpack.c.h.b16 %v69
    %v518 = vunpack.c.l.b16 %v70
    %v519 = vunpack.c.h.b16 %v70
    %v520 = vunpack.c.l.b16 %v71
    %v521 = vunpack.c.h.b16 %v71
    %v522 = vunpack.c.l.b16 %v72
    %v523 = vunpack.c.h.b16 %v72
    %v524 = vunpack.c.l.b16 %v73
    %v525 = vunpack.c.h.b16 %v73
    %v526 = vunpack.c.l.b16 %v74
    %v527 = vunpack.c.h.b16 %v74
    %v528 = vunpack.c.l.b16 %v75
    %v529 = vunpack.c.h.b16 %v75
    %v530 = vunpack.c.l.b16 %v76
    %v531 = vunpack.c.h.b16 %v76
    %v532 = vunpack.c.l.b16 %v77
    %v533 = vunpack.c.h.b16 %v77
    %v534 = vunpack.c.l.b16 %v78
    %v535 = vunpack.c.h.b16 %v78
    %v536 = vunpack.c.l.b16 %v79
    %v537 = vunpack.c.h.b16 %v79
    %v538 = vunpack.c.l.b16 %v80
    %v539 = vunpack.c.h.b16 %v80
    %v540 = vunpack.c.l.b16 %v81
    %v541 = vunpack.c.h.b16 %v81
    %v542 = vunpack.c.l.b16 %v82
    %v543 = vunpack.c.h.b16 %v82
    %v544 = vunpack.c.l.b16 %v83
    %v545 = vunpack.c.h.b16 %v83
    %v546 = vunpack.c.l.b16 %v84
    %v547 = vunpack.c.h.b16 %v84
    %v548 = vunpack.c.l.b16 %v85
    %v549 = vunpack.c.h.b16 %v85
    %v550 = vunpack.c.l.b16 %v86
    %v551 = vunpack.c.h.b16 %v86
    %v552 = vunpack.c.l.b16 %v87
    %v553 = vunpack.c.h.b16 %v87
    %v554 = vunpack.c.l.b16 %v88
    %v555 = vunpack.c.h.b16 %v88
    %v556 = vunpack.c.l.b16 %v89
    %v557 = vunpack.c.h.b16 %v89
    %v558 = vunpack.c.l.b16 %v90
    %v559 = vunpack.c.h.b16 %v90
    %v560 = vunpack.c.l.b16 %v91
    %v561 = vunpack.c.h.b16 %v91
    %v562 = vunpack.c.l.b16 %v92
    %v563 = vunpack.c.h.b16 %v92
    %v564 = vunpack.c.l.b16 %v93
    %v565 = vunpack.c.h.b16 %v93
    %v566 = vunpack.c.l.b16 %v94
    %v567 = vunpack.c.h.b16 %v94
    %v568 = vunpack.c.l.b16 %v95
    %v569 = vunpack.c.h.b16 %v95
    %v570 = vunpack.c.l.b16 %v96
    %v571 = vunpack.c.h.b16 %v96
    %v572 = vunpack.c.l.b16 %v97
    %v573 = vunpack.c.h.b16 %v97
    %v574 = vunpack.c.l.b16 %v98
    %v575 = vunpack.c.h.b16 %v98
    %v576 = vunpack.c.l.b16 %v99
    %v577 = vunpack.c.h.b16 %v99
    %v578 = vunpack.c.l.b16 %v100
    %v579 = vunpack.c.h.b16 %v100
    %v580 = vunpack.c.l.b16 %v101
    %v581 = vunpack.c.h.b16 %v101
    %v582 = vunpack.c.l.b16 %v102
    %v583 = vunpack.c.h.b16 %v102
    %v584 = vunpack.c.l.b16 %v103
    %v585 = vunpack.c.h.b16 %v103
    %v586 = vunpack.c.l.b16 %v104
    %v587 = vunpack.c.h.b16 %v104
    %v588 = vunpack.c.l.b16 %v105
    %v589 = vunpack.c.h.b16 %v105
    %v590 = vunpack.c.l.b16 %v106
    %v591 = vunpack.c.h.b16 %v106
    %v592 = vunpack.c.l.b16 %v107
    %v593 = vunpack.c.h.b16 %v107
    %v594 = vunpack.c.l.b16 %v108
    %v595 = vunpack.c.h.b16 %v108
    %v596 = vunpack.c.l.b16 %v109
    %v597 = vunpack.c.h.b16 %v109
    %v598 = vunpack.c.l.b16 %v110
    %v599 = vunpack.c.h.b16 %v110
    %v600 = vunpack.c.l.b16 %v111
    %v601 = vunpack.c.h.b16 %v111
    %v602 = vunpack.c.l.b16 %v112
    %v603 = vunpack.c.h.b16 %v112
    %v604 = vunpack.c.l.b16 %v113
    %v605 = vunpack.c.h.b16 %v113
    %v606 = vunpack.c.l.b16 %v114
    %v607 = vunpack.c.h.b16 %v114
    %v608 = vunpack.c.l.b16 %v115
    %v609 = vunpack.c.h.b16 %v115
    %v610 = vunpack.c.l.b16 %v116
    %v611 = vunpack.c.h.b16 %v116
    %v612 = vunpack.c.l.b16 %v117
    %v613 = vunpack.c.h.b16 %v117
    %v614 = vunpack.c.l.b16 %v118
    %v615 = vunpack.c.h.b16 %v118
    %v616 = vunpack.c.l.b16 %v119
    %v617 = vunpack.c.h.b16 %v119
    %v618 = vunpack.c.l.b16 %v120
    %v619 = vunpack.c.h.b16 %v120
    %v620 = vunpack.c.l.b16 %v121
    %v621 = vunpack.c.h.b16 %v121
    %v622 = vunpack.c.l.b16 %v122
    %v623 = vunpack.c.h.b16 %v122
    %v624 = vunpack.c.l.b16 %v123
    %v625 = vunpack.c.h.b16 %v123
    %v626 = vunpack.c.l.b16 %v124
    %v627 = vunpack.c.h.b16 %v124
    %v628 = vunpack.c.l.b16 %v125
    %v629 = vunpack.c.h.b16 %v125
    %v630 = vunpack.c.l.b16 %v126
    %v631 = vunpack.c.h.b16 %v126
    %v632 = vunpack.c.l.b16 %v127
    %v633 = vunpack.c.h.b16 %v127
    %v634 = vunpack.c.l.b16 %v128
    %v635 = vunpack.c.h.b16 %v128
    %v636 = vunpack.c.l.b16 %v129
    %v637 = vunpack.c.h.b16 %v129
    %v638 = vunpack.c.l.b16 %v130
    %v639 = vunpack.c.h.b16 %v130
    %v640 = vunpack.c.l.b16 %v131
    %v641 = vunpack.c.h.b16 %v131
    %v642 = vunpack.c.l.b16 %v132
    %v643 = vunpack.c.h.b16 %v132
    %v644 = vunpack.c.l.b16 %v133
    %v645 = vunpack.c.h.b16 %v133
    %v646 = vunpack.c.l.b16 %v134
    %v647 = vunpack.c.h.b16 %v134
    %v648 = vunpack.c.l.b16 %v135
    %v649 = vunpack.c.h.b16 %v135
    %v650 = vunpack.c.l.b16 %v136
    %v651 = vunpack.c.h.b16 %v136
    %v652 = vunpack.c.l.b16 %v137
    %v653 = vunpack.c.h.b16 %v137
    %v654 = vunpack.c.l.b16 %v138
    %v655 = vunpack.c.h.b16 %v138
    %v656 = vunpack.c.l.b16 %v139
    %v657 = vunpack.c.h.b16 %v139
    %v658 = vunpack.c.l.b16 %v140
    %v659 = vunpack.c.h.b16 %v140
    %v660 = vunpack.c.l.b16 %v141
    %v661 = vunpack.c.h.b16 %v141
    %v662 = vunpack.c.l.b16 %v142
    %v663 = vunpack.c.h.b16 %v142
    %v664 = vunpack.c.l.b16 %v143
    %v665 = vunpack.c.h.b16 %v143
    %v666 = vunpack.c.l.b16 %v144
    %v667 = vunpack.c.h.b16 %v144
    %v668 = vunpack.c.l.b16 %v145
    %v669 = vunpack.c.h.b16 %v145
    %v670 = vunpack.c.l.b16 %v146
    %v671 = vunpack.c.h.b16 %v146
    %v672 = vunpack.c.l.b16 %v147
    %v673 = vunpack.c.h.b16 %v147
    %v674 = vunpack.c.l.b16 %v148
    %v675 = vunpack.c.h.b16 %v148
    %v676 = vunpack.c.l.b16 %v149
    %v677 = vunpack.c.h.b16 %v149
    %v678 = vunpack.c.l.b16 %v150
    %v679 = vunpack.c.h.b16 %v150
    %v680 = vunpack.c.l.b16 %v151
    %v681 = vunpack.c.h.b16 %v151
    %v682 = vunpack.c.l.b16 %v152
    %v683 = vunpack.c.h.b16 %v152
    %v684 = vunpack.c.l.b16 %v153
    %v685 = vunpack.c.h.b16 %v153
    %v686 = vunpack.c.l.b16 %v154
    %v687 = vunpack.c.h.b16 %v154
    %v688 = vunpack.c.l.b16 %v155
    %v689 = vunpack.c.h.b16 %v155
    %v690 = vunpack.c.l.b16 %v156
    %v691 = vunpack.c.h.b16 %v156
    %v692 = vunpack.c.l.b16 %v157
    %v693 = vunpack.c.h.b16 %v157
    %v694 = vunpack.c.l.b16 %v158
    %v695 = vunpack.c.h.b16 %v158
    %v696 = vunpack.c.l.b16 %v159
    %v697 = vunpack.c.h.b16 %v159
    %v698 = vunpack.c.l.b16 %v160
    %v699 = vunpack.c.h.b16 %v160
    %v700 = vunpack.c.l.b16 %v161
    %v701 = vunpack.c.h.b16 %v161
    %v702 = vunpack.c.l.b16 %v162
    %v703 = vunpack.c.h.b16 %v162
    %v704 = vunpack.c.l.b16 %v163
    %v705 = vunpack.c.h.b16 %v163
    %v706 = vunpack.c.l.b16 %v164
    %v707 = vunpack.c.h.b16 %v164
    %v708 = vunpack.c.l.b16 %v165
    %v709 = vunpack.c.h.b16 %v165
    %v710 = vunpack.c.l.b16 %v166
    %v711 = vunpack.c.h.b16 %v166
    %v712 = vunpack.c.l.b16 %v167
    %v713 = vunpack.c.h.b16 %v167
    %v714 = vunpack.c.l.b16 %v168
    %v715 = vunpack.c.h.b16 %v168
    %v716 = vunpack.c.l.b16 %v169
    %v717 = vunpack.c.h.b16 %v169
    %v718 = vunpack.c.l.b16 %v170
    %v719 = vunpack.c.h.b16 %v170
    %v720 = vunpack.c.l.b16 %v171
    %v721 = vunpack.c.h.b16 %v171
    %v722 = vunpack.c.l.b16 %v172
    %v723 = vunpack.c.h.b16 %v172
    %v724 = vunpack.c.l.b16 %v173
    %v725 = vunpack.c.h.b16 %v173
    %v726 = vunpack.c.l.b16 %v174
    %v727 = vunpack.c.h.b16 %v174
    %v728 = vunpack.c.l.b16 %v175
    %v729 = vunpack.c.h.b16 %v175
    %v730 = vunpack.c.l.b16 %v176
    %v731 = vunpack.c.h.b16 %v176
    %v732 = vunpack.c.l.b16 %v177
    %v733 = vunpack.c.h.b16 %v177
    %v734 = vunpack.c.l.b16 %v178
    %v735 = vunpack.c.h.b16 %v178
    %v736 = vunpack.c.l.b16 %v179
    %v737 = vunpack.c.h.b16 %v179
    %v738 = vunpack.c.l.b16 %v180
    %v739 = vunpack.c.h.b16 %v180
    %v740 = vunpack.c.l.b16 %v181
    %v741 = vunpack.c.h.b16 %v181
    %v742 = vunpack.c.l.b16 %v182
    %v743 = vunpack.c.h.b16 %v182
    %v744 = vunpack.c.l.b16 %v183
    %v745 = vunpack.c.h.b16 %v183
    %v746 = vunpack.c.l.b16 %v184
    %v747 = vunpack.c.h.b16 %v184
    %v748 = vunpack.c.l.b16 %v185
    %v749 = vunpack.c.h.b16 %v185
    %v750 = vunpack.c.l.b16 %v186
    %v751 = vunpack.c.h.b16 %v186
    %v752 = vunpack.c.l.b16 %v187
    %v753 = vunpack.c.h.b16 %v187
    %v754 = vunpack.c.l.b16 %v188
    %v755 = vunpack.c.h.b16 %v188
    %v756 = vunpack.c.l.b16 %v189
    %v757 = vunpack.c.h.b16 %v189
    %v758 = vunpack.c.l.b16 %v190
    %v759 = vunpack.c.h.b16 %v190
    %v760 = vunpack.c.l.b16 %v191
    %v761 = vunpack.c.h.b16 %v191
    %v762 = vunpack.c.l.b16 %v192
    %v763 = vunpack.c.h.b16 %v192
    %v764 = vunpack.c.l.b16 %v193
    %v765 = vunpack.c.h.b16 %v193
    %v766 = vunpack.c.l.b16 %v194
    %v767 = vunpack.c.h.b16 %v194
    %v768 = vunpack.c.l.b16 %v195
    %v769 = vunpack.c.h.b16 %v195
    %v770 = vunpack.c.l.b16 %v196
    %v771 = vunpack.c.h.b16 %v196
    %v772 = vunpack.c.l.b16 %v197
    %v773 = vunpack.c.h.b16 %v197
    %v774 = vunpack.c.l.b16 %v198
    %v775 = vunpack.c.h.b16 %v198
    %v776 = vunpack.c.l.b16 %v199
    %v777 = vunpack.c.h.b16 %v199
    %v778 = vunpack.c.l.b16 %v200
    %v779 = vunpack.c.h.b16 %v200
    %v780 = vunpack.c.l.b16 %v201
    %v781 = vunpack.c.h.b16 %v201
    %v782 = vunpack.c.l.b16 %v202
    %v783 = vunpack.c.h.b16 %v202
    %v784 = vunpack.c.l.b16 %v203
    %v785 = vunpack.c.h.b16 %v203
    %v786 = vunpack.c.l.b16 %v204
    %v787 = vunpack.c.h.b16 %v204
    %v788 = vunpack.c.l.b16 %v205
    %v789 = vunpack.c.h.b16 %v205
    %v790 = vunpack.c.l.b16 %v206
    %v791 = vunpack.c.h.b16 %v206
    %v792 = vunpack.c.l.b16 %v207
    %v793 = vunpack.c.h.b16 %v207
    %v794 = vunpack.c.l.b16 %v208
    %v795 = vunpack.c.h.b16 %v208
    %v796 = vunpack.c.l.b16 %v209
    %v797 = vunpack.c.h.b16 %v209
    %v798 = vunpack.c.l.b16 %v210
    %v799 = vunpack.c.h.b16 %v210
    %v800 = vunpack.c.l.b16 %v211
    %v801 = vunpack.c.h.b16 %v211
    %v802 = vunpack.c.l.b16 %v212
    %v803 = vunpack.c.h.b16 %v212
    %v804 = vunpack.c.l.b16 %v213
    %v805 = vunpack.c.h.b16 %v213
    %v806 = vunpack.c.l.b16 %v214
    %v807 = vunpack.c.h.b16 %v214
    %v808 = vunpack.c.l.b16 %v215
    %v809 = vunpack.c.h.b16 %v215
    %v810 = vunpack.c.l.b16 %v216
    %v811 = vunpack.c.h.b16 %v216
    %v812 = vunpack.c.l.b16 %v217
    %v813 = vunpack.c.h.b16 %v217
    %v814 = vunpack.c.l.b16 %v218
    %v815 = vunpack.c.h.b16 %v218
    %v816 = vunpack.c.l.b16 %v219
    %v817 = vunpack.c.h.b16 %v219
    %v818 = vunpack.c.l.b16 %v220
    %v819 = vunpack.c.h.b16 %v220
    %v820 = vunpack.c.l.b16 %v221
    %v821 = vunpack.c.h.b16 %v221
    %v822 = vunpack.c.l.b16 %v222
    %v823 = vunpack.c.h.b16 %v222
    %v824 = vunpack.c.l.b16 %v223
    %v825 = vunpack.c.h.b16 %v223
    %v826 = vunpack.c.l.b16 %v224
    %v827 = vunpack.c.h.b16 %v224
    %v828 = vunpack.c.l.b16 %v225
    %v829 = vunpack.c.h.b16 %v225
    %v830 = vunpack.c.l.b16 %v226
    %v831 = vunpack.c.h.b16 %v226
    %v832 = vunpack.c.l.b16 %v227
    %v833 = vunpack.c.h.b16 %v227
    %v834 = vunpack.c.l.b16 %v228
    %v835 = vunpack.c.h.b16 %v228
    %v836 = vunpack.c.l.b16 %v229
    %v837 = vunpack.c.h.b16 %v229
    %v838 = vunpack.c.l.b16 %v230
    %v839 = vunpack.c.h.b16 %v230
    %v840 = vunpack.c.l.b16 %v231
    %v841 = vunpack.c.h.b16 %v231
    %v842 = vunpack.c.l.b16 %v232
    %v843 = vunpack.c.h.b16 %v232
    %v844 = vunpack.c.l.b16 %v233
    %v845 = vunpack.c.h.b16 %v233
    %v846 = vunpack.c.l.b16 %v234
    %v847 = vunpack.c.h.b16 %v234
    %v848 = vunpack.c.l.b16 %v235
    %v849 = vunpack.c.h.b16 %v235
    %v850 = vunpack.c.l.b16 %v236
    %v851 = vunpack.c.h.b16 %v236
    %v852 = vunpack.c.l.b16 %v237
    %v853 = vunpack.c.h.b16 %v237
    %v854 = vunpack.c.l.b16 %v238
    %v855 = vunpack.c.h.b16 %v238
    %v856 = vunpack.c.l.b16 %v239
    %v857 = vunpack.c.h.b16 %v239
    %v858 = vunpack.c.l.b16 %v240
    %v859 = vunpack.c.h.b16 %v240
    %v860 = vunpack.c.l.b16 %v241
    %v861 = vunpack.c.h.b16 %v241
    %v862 = vunpack.c.l.b16 %v242
    %v863 = vunpack.c.h.b16 %v242
    %v864 = vunpack.c.l.b16 %v243
    %v865 = vunpack.c.h.b16 %v243
    %v866 = vunpack.c.l.b16 %v244
    %v867 = vunpack.c.h.b16 %v244
    %v868 = vunpack.c.l.b16 %v245
    %v869 = vunpack.c.h.b16 %v245
    %v870 = vunpack.c.l.b16 %v246
    %v871 = vunpack.c.h.b16 %v246
    %v872 = vunpack.c.l.b16 %v247
    %v873 = vunpack.c.h.b16 %v247
    %v874 = vunpack.c.l.b16 %v248
    %v875 = vunpack.c.h.b16 %v248
    %v876 = vunpack.c.l.b16 %v249
    %v877 = vunpack.c.h.b16 %v249
    %v878 = vunpack.c.l.b16 %v250
    %v879 = vunpack.c.h.b16 %v250
    %v880 = vunpack.c.l.b16 %v251
    %v881 = vunpack.c.h.b16 %v251
    %v882 = vunpack.c.l.b16 %v252
    %v883 = vunpack.c.h.b16 %v252
    %v884 = vunpack.c.l.b16 %v253
    %v885 = vunpack.c.h.b16 %v253
    %v886 = vunpack.c.l.b16 %v254
    %v887 = vunpack.c.h.b16 %v254
    %v888 = vunpack.c.l.b16 %v255
    %v889 = vunpack.c.h.b16 %v255
    %v890 = vpack.c.b16 %v502, %v498
    %v891 = vpack.c.b16 %v503, %v499
    %v892 = vpack.c.b16 %v504, %v500
    %v893 = vpack.c.b16 %v505, %v501
    %v894 = vpack.c.b16 %v510, %v506
    %v895 = vpack.c.b16 %v511, %v507
    %v896 = vpack.c.b16 %v512, %v508
    %v897 = vpack.c.b16 %v513, %v509
    %v898 = vpack.c.b16 %v518, %v514
    %v899 = vpack.c.b16 %v519, %v515
    %v900 = vpack.c.b16 %v520, %v516
    %v901 = vpack.c.b16 %v521, %v517
    %v902 = vpack.c.b16 %v526, %v522
    %v903 = vpack.c.b16 %v527, %v523
    %v904 = vpack.c.b16 %v528, %v524
    %v905 = vpack.c.b16 %v529, %v525
    %v906 = vpack.c.b16 %v534, %v530
    %v907 = vpack.c.b16 %v535, %v531
    %v908 = vpack.c.b16 %v536, %v532
    %v909 = vpack.c.b16 %v537, %v533
    %v910 = vpack.c.b16 %v542, %v538
    %v911 = vpack.c.b16 %v543, %v539
    %v912 = vpack.c.b16 %v544, %v540
    %v913 = vpack.c.b16 %v545, %v541
    %v914 = vpack.c.b16 %v550, %v546
    %v915 = vpack.c.b16 %v551, %v547
    %v916 = vpack.c.b16 %v552, %v548
    %v917 = vpack.c.b16 %v553, %v549
    %v918 = vpack.c.b16 %v558, %v554
    %v919 = vpack.c.b16 %v559, %v555
    %v920 = vpack.c.b16 %v560, %v556
    %v921 = vpack.c.b16 %v561, %v557
    %v922 = vpack.c.b16 %v566, %v562
    %v923 = vpack.c.b16 %v567, %v563
    %v924 = vpack.c.b16 %v568, %v564
    %v925 = vpack.c.b16 %v569, %v565
    %v926 = vpack.c.b16 %v574, %v570
    %v927 = vpack.c.b16 %v575, %v571
    %v928 = vpack.c.b16 %v576, %v572
    %v929 = vpack.c.b16 %v577, %v573
    %v930 = vpack.c.b16 %v582, %v578
    %v931 = vpack.c.b16 %v583, %v579
    %v932 = vpack.c.b16 %v584, %v580
    %v933 = vpack.c.b16 %v585, %v581
    %v934 = vpack.c.b16 %v590, %v586
    %v935 = vpack.c.b16 %v591, %v587
    %v936 = vpack.c.b16 %v592, %v588
    %v937 = vpack.c.b16 %v593, %v589
    %v938 = vpack.c.b16 %v598, %v594
    %v939 = vpack.c.b16 %v599, %v595
    %v940 = vpack.c.b16 %v600, %v596
    %v941 = vpack.c.b16 %v601, %v597
    %v942 = vpack.c.b16 %v606, %v602
    %v943 = vpack.c.b16 %v607, %v603
    %v944 = vpack.c.b16 %v608, %v604
    %v945 = vpack.c.b16 %v609, %v605
    %v946 = vpack.c.b16 %v614, %v610
    %v947 = vpack.c.b16 %v615, %v611
    %v948 = vpack.c.b16 %v616, %v612
    %v949 = vpack.c.b16 %v617, %v613
    %v950 = vpack.c.b16 %v622, %v618
    %v951 = vpack.c.b16 %v623, %v619
    %v952 = vpack.c.b16 %v624, %v620
    %v953 = vpack.c.b16 %v625, %v621
    %v954 = vpack.c.b16 %v630, %v626
    %v955 = vpack.c.b16 %v631, %v627
    %v956 = vpack.c.b16 %v632, %v628
    %v957 = vpack.c.b16 %v633, %v629
    %v958 = vpack.c.b16 %v638, %v634
    %v959 = vpack.c.b16 %v639, %v635
    %v960 = vpack.c.b16 %v640, %v636
    %v961 = vpack.c.b16 %v641, %v637
    %v962 = vpack.c.b16 %v646, %v642
    %v963 = vpack.c.b16 %v647, %v643
    %v964 = vpack.c.b16 %v648, %v644
    %v965 = vpack.c.b16 %v649, %v645
    %v966 = vpack.c.b16 %v654, %v650
    %v967 = vpack.c.b16 %v655, %v651
    %v968 = vpack.c.b16 %v656, %v652
    %v969 = vpack.c.b16 %v657, %v653
    %v970 = vpack.c.b16 %v662, %v658
    %v971 = vpack.c.b16 %v663, %v659
    %v972 = vpack.c.b16 %v664, %v660
    %v973 = vpack.c.b16 %v665, %v661
    %v974 = vpack.c.b16 %v670, %v666
    %v975 = vpack.c.b16 %v671, %v667
    %v976 = vpack.c.b16 %v672, %v668
    %v977 = vpack.c.b16 %v673, %v669
    %v978 = vpack.c.b16 %v678, %v674
    %v979 = vpack.c.b16 %v679, %v675
    %v980 = vpack.c.b16 %v680, %v676
    %v981 = vpack.c.b16 %v681, %v677
    %v982 = vpack.c.b16 %v686, %v682
    %v983 = vpack.c.b16 %v687, %v683
    %v984 = vpack.c.b16 %v688, %v684
    %v985 = vpack.c.b16 %v689, %v685
    %v986 = vpack.c.b16 %v694, %v690
    %v987 = vpack.c.b16 %v695, %v691
    %v988 = vpack.c.b16 %v696, %v692
    %v989 = vpack.c.b16 %v697, %v693
    %v990 = vpack.c.b16 %v702, %v698
    %v991 = vpack.c.b16 %v703, %v699
    %v992 = vpack.c.b16 %v704, %v700
    %v993 = vpack.c.b16 %v705, %v701
    %v994 = vpack.c.b16 %v710, %v706
    %v995 = vpack.c.b16 %v711, %v707
    %v996 = vpack.c.b16 %v712, %v708
    %v997 = vpack.c.b16 %v713, %v709
    %v998 = vpack.c.b16 %v718, %v714
    %v999 = vpack.c.b16 %v719, %v715
    %v1000 = vpack.c.b16 %v720, %v716
    %v1001 = vpack.c.b16 %v721, %v717
    %v1002 = vpack.c.b16 %v726, %v722
    %v1003 = vpack.c.b16 %v727, %v723
    %v1004 = vpack.c.b16 %v728, %v724
    %v1005 = vpack.c.b16 %v729, %v725
    %v1006 = vpack.c.b16 %v734, %v730
    %v1007 = vpack.c.b16 %v735, %v731
    %v1008 = vpack.c.b16 %v736, %v732
    %v1009 = vpack.c.b16 %v737, %v733
    %v1010 = vpack.c.b16 %v742, %v738
    %v1011 = vpack.c.b16 %v743, %v739
    %v1012 = vpack.c.b16 %v744, %v740
    %v1013 = vpack.c.b16 %v745, %v741
    %v1014 = vpack.c.b16 %v750, %v746
    %v1015 = vpack.c.b16 %v751, %v747
    %v1016 = vpack.c.b16 %v752, %v748
    %v1017 = vpack.c.b16 %v753, %v749
    %v1018 = vpack.c.b16 %v758, %v754
    %v1019 = vpack.c.b16 %v759, %v755
    %v1020 = vpack.c.b16 %v760, %v756
    %v1021 = vpack.c.b16 %v761, %v757
    %v1022 = vpack.c.b16 %v766, %v762
    %v1023 = vpack.c.b16 %v767, %v763
    %v1024 = vpack.c.b16 %v768, %v764
    %v1025 = vpack.c.b16 %v769, %v765
    %v1026 = vpack.c.b16 %v774, %v770
    %v1027 = vpack.c.b16 %v775, %v771
    %v1028 = vpack.c.b16 %v776, %v772
    %v1029 = vpack.c.b16 %v777, %v773
    %v1030 = vpack.c.b16 %v782, %v778
    %v1031 = vpack.c.b16 %v783, %v779
    %v1032 = vpack.c.b16 %v784, %v780
    %v1033 = vpack.c.b16 %v785, %v781
    %v1034 = vpack.c.b16 %v790, %v786
    %v1035 = vpack.c.b16 %v791, %v787
    %v1036 = vpack.c.b16 %v792, %v788
    %v1037 = vpack.c.b16 %v793, %v789
    %v1038 = vpack.c.b16 %v798, %v794
    %v1039 = vpack.c.b16 %v799, %v795
    %v1040 = vpack.c.b16 %v800, %v796
    %v1041 = vpack.c.b16 %v801, %v797
    %v1042 = vpack.c.b16 %v806, %v802
    %v1043 = vpack.c.b16 %v807, %v803
    %v1044 = vpack.c.b16 %v808, %v804
    %v1045 = vpack.c.b16 %v809, %v805
    %v1046 = vpack.c.b16 %v814, %v810
    %v1047 = vpack.c.b16 %v815, %v811
    %v1048 = vpack.c.b16 %v816, %v812
    %v1049 = vpack.c.b16 %v817, %v813
    %v1050 = vpack.c.b16 %v822, %v818
    %v1051 = vpack.c.b16 %v823, %v819
    %v1052 = vpack.c.b16 %v824, %v820
    %v1053 = vpack.c.b16 %v825, %v821
    %v1054 = vpack.c.b16 %v830, %v826
    %v1055 = vpack.c.b16 %v831, %v827
    %v1056 = vpack.c.b16 %v832, %v828
    %v1057 = vpack.c.b16 %v833, %v829
    %v1058 = vpack.c.b16 %v838, %v834
    %v1059 = vpack.c.b16 %v839, %v835
    %v1060 = vpack.c.b16 %v840, %v836
    %v1061 = vpack.c.b16 %v841, %v837
    %v1062 = vpack.c.b16 %v846, %v842
    %v1063 = vpack.c.b16 %v847, %v843
    %v1064 = vpack.c.b16 %v848, %v844
    %v1065 = vpack.c.b16 %v849, %v845
    %v1066 = vpack.c.b16 %v854, %v850
    %v1067 = vpack.c.b16 %v855, %v851
    %v1068 = vpack.c.b16 %v856, %v852
    %v1069 = vpack.c.b16 %v857, %v853
    %v1070 = vpack.c.b16 %v862, %v858
    %v1071 = vpack.c.b16 %v863, %v859
    %v1072 = vpack.c.b16 %v864, %v860
    %v1073 = vpack.c.b16 %v865, %v861
    %v1074 = vpack.c.b16 %v870, %v866
    %v1075 = vpack.c.b16 %v871, %v867
    %v1076 = vpack.c.b16 %v872, %v868
    %v1077 = vpack.c.b16 %v873, %v869
    %v1078 = vpack.c.b16 %v878, %v874
    %v1079 = vpack.c.b16 %v879, %v875
    %v1080 = vpack.c.b16 %v880, %v876
    %v1081 = vpack.c.b16 %v881, %v877
    %v1082 = vpack.c.b16 %v886, %v882
    %v1083 = vpack.c.b16 %v887, %v883
    %v1084 = vpack.c.b16 %v888, %v884
    %v1085 = vpack.c.b16 %v889, %v885
    %vm1282 = vcmask 130048
    %v1284 = vsel %vm1282, %v295, 0
    %1286 = vmatprep.subr.bf16.mxu0 %v919
    %1287 = vmatpush1.bf16.msra.mxu0 %v918
    %1288 = vmatprep.subr.bf16.mxu0 %v915
    %1289 = vmatpush1.bf16.msra.mxu0 %v914
    %1290 = vmatprep.subr.bf16.mxu0 %v911
    %1291 = vmatpush1.bf16.msra.mxu0 %v910
    %1292 = vmatprep.subr.bf16.mxu0 %v907
    %1293 = vmatpush1.bf16.msra.mxu0 %v906
    %1294 = vmatprep.subr.bf16.mxu0 %v903
    %1295 = vmatpush1.bf16.msra.mxu0 %v902
    %1296 = vmatprep.subr.bf16.mxu0 %v899
    %1297 = vmatpush1.bf16.msra.mxu0 %v898
    %1298 = vmatprep.subr.bf16.mxu0 %v895
    %1299 = vmatpush1.bf16.msra.mxu0 %v894
    %1300 = vmatprep.subr.bf16.mxu0 %v891
    %1301 = vmatpush1.bf16.msra.mxu0 %v890
    %1302 = vmatprep.subr.bf16.mxu0 %v951
    %1303 = vmatpush2.bf16.msra.mxu0 %v950
    %1304 = vmatprep.subr.bf16.mxu0 %v947
    %1305 = vmatpush2.bf16.msra.mxu0 %v946
    %1306 = vmatprep.subr.bf16.mxu0 %v943
    %1307 = vmatpush2.bf16.msra.mxu0 %v942
    %1308 = vmatprep.subr.bf16.mxu0 %v939
    %1309 = vmatpush2.bf16.msra.mxu0 %v938
    %1310 = vmatprep.subr.bf16.mxu0 %v935
    %1311 = vmatpush2.bf16.msra.mxu0 %v934
    %1312 = vmatprep.subr.bf16.mxu0 %v931
    %1313 = vmatpush2.bf16.msra.mxu0 %v930
    %1314 = vmatprep.subr.bf16.mxu0 %v927
    %1315 = vmatpush2.bf16.msra.mxu0 %v926
    %1316 = vmatprep.subr.bf16.mxu0 %v923
    %1317 = vmatpush2.bf16.msra.mxu0 %v922
    %1318 = vmatprep.mubr.bf16.mxu0 %v290
    %1319 = vmatmul.mubr.bf16.gmra.mxu0 %v289
    %v1320 = vpop.f32.mrf.mxu0
    %v1321 = vadd.f32 %v261, %v1320
    %v1322 = vpop.f32.mrf.mxu0
    %v1323 = vadd.f32 %v265, %v1322
    %v1324 = vpop.f32.mrf.mxu0
    %v1325 = vpop.f32.mrf.mxu0
    %1326 = vdwg.mxu0
    %1327 = vmatprep.subr.bf16.mxu0 %v983
    %1328 = vmatpush1.bf16.msra.mxu0 %v982
    %1329 = vmatprep.subr.bf16.mxu0 %v979
    %1330 = vmatpush1.bf16.msra.mxu0 %v978
    %1331 = vmatprep.subr.bf16.mxu0 %v975
    %1332 = vmatpush1.bf16.msra.mxu0 %v974
    %1333 = vmatprep.subr.bf16.mxu0 %v971
    %1334 = vmatpush1.bf16.msra.mxu0 %v970
    %1335 = vmatprep.subr.bf16.mxu0 %v967
    %1336 = vmatpush1.bf16.msra.mxu0 %v966
    %1337 = vmatprep.subr.bf16.mxu0 %v963
    %1338 = vmatpush1.bf16.msra.mxu0 %v962
    %1339 = vmatprep.subr.bf16.mxu0 %v959
    %1340 = vmatpush1.bf16.msra.mxu0 %v958
    %1341 = vmatprep.subr.bf16.mxu0 %v955
    %1342 = vmatpush1.bf16.msra.mxu0 %v954
    %1343 = vmatprep.subr.bf16.mxu0 %v1015
    %1344 = vmatpush2.bf16.msra.mxu0 %v1014
    %1345 = vmatprep.subr.bf16.mxu0 %v1011
    %1346 = vmatpush2.bf16.msra.mxu0 %v1010
    %1347 = vmatprep.subr.bf16.mxu0 %v1007
    %1348 = vmatpush2.bf16.msra.mxu0 %v1006
    %1349 = vmatprep.subr.bf16.mxu0 %v1003
    %1350 = vmatpush2.bf16.msra.mxu0 %v1002
    %1351 = vmatprep.subr.bf16.mxu0 %v999
    %1352 = vmatpush2.bf16.msra.mxu0 %v998
    %1353 = vmatprep.subr.bf16.mxu0 %v995
    %1354 = vmatpush2.bf16.msra.mxu0 %v994
    %1355 = vmatprep.subr.bf16.mxu0 %v991
    %1356 = vmatpush2.bf16.msra.mxu0 %v990
    %1357 = vmatprep.subr.bf16.mxu0 %v987
    %1358 = vmatpush2.bf16.msra.mxu0 %v986
    %1359 = vmatprep.mubr.bf16.mxu0 %v292
    %1360 = vmatmul.mubr.bf16.gmra.mxu0 %v291
    %v1361 = vpop.f32.mrf.mxu0
    %v1362 = vadd.f32 %v1321, %v1361
    %v1363 = vpop.f32.mrf.mxu0
    %v1364 = vadd.f32 %v1323, %v1363
    %v1365 = vpop.f32.mrf.mxu0
    %v1366 = vpop.f32.mrf.mxu0
    %1367 = vdwg.mxu0
    %1368 = vmatprep.subr.bf16.mxu0 %v1047
    %1369 = vmatpush1.bf16.msra.mxu0 %v1046
    %1370 = vmatprep.subr.bf16.mxu0 %v1043
    %1371 = vmatpush1.bf16.msra.mxu0 %v1042
    %1372 = vmatprep.subr.bf16.mxu0 %v1039
    %1373 = vmatpush1.bf16.msra.mxu0 %v1038
    %1374 = vmatprep.subr.bf16.mxu0 %v1035
    %1375 = vmatpush1.bf16.msra.mxu0 %v1034
    %1376 = vmatprep.subr.bf16.mxu0 %v1031
    %1377 = vmatpush1.bf16.msra.mxu0 %v1030
    %1378 = vmatprep.subr.bf16.mxu0 %v1027
    %1379 = vmatpush1.bf16.msra.mxu0 %v1026
    %1380 = vmatprep.subr.bf16.mxu0 %v1023
    %1381 = vmatpush1.bf16.msra.mxu0 %v1022
    %1382 = vmatprep.subr.bf16.mxu0 %v1019
    %1383 = vmatpush1.bf16.msra.mxu0 %v1018
    %1384 = vmatprep.subr.bf16.mxu0 %v1079
    %1385 = vmatpush2.bf16.msra.mxu0 %v1078
    %1386 = vmatprep.subr.bf16.mxu0 %v1075
    %1387 = vmatpush2.bf16.msra.mxu0 %v1074
    %1388 = vmatprep.subr.bf16.mxu0 %v1071
    %1389 = vmatpush2.bf16.msra.mxu0 %v1070
    %1390 = vmatprep.subr.bf16.mxu0 %v1067
    %1391 = vmatpush2.bf16.msra.mxu0 %v1066
    %1392 = vmatprep.subr.bf16.mxu0 %v1063
    %1393 = vmatpush2.bf16.msra.mxu0 %v1062
    %1394 = vmatprep.subr.bf16.mxu0 %v1059
    %1395 = vmatpush2.bf16.msra.mxu0 %v1058
    %1396 = vmatprep.subr.bf16.mxu0 %v1055
    %1397 = vmatpush2.bf16.msra.mxu0 %v1054
    %1398 = vmatprep.subr.bf16.mxu0 %v1051
    %1399 = vmatpush2.bf16.msra.mxu0 %v1050
    %1400 = vmatprep.mubr.bf16.mxu0 %v294
    %1401 = vmatmul.mubr.bf16.gmra.mxu0 %v293
    %v1402 = vpop.f32.mrf.mxu0
    %v1403 = vadd.f32 %v1362, %v1402
    %v1404 = vpop.f32.mrf.mxu0
    %v1405 = vadd.f32 %v1364, %v1404
    %v1406 = vpop.f32.mrf.mxu0
    %v1407 = vpop.f32.mrf.mxu0
    %1408 = vdwg.mxu0
    %1409 = vmatprep.subr.bf16.mxu0 0
    %1410 = vmatpush1.bf16.msra.mxu0 0
    %1411 = vmatprep.subr.bf16.mxu0 0
    %1412 = vmatpush1.bf16.msra.mxu0 0
    %1413 = vmatprep.subr.bf16.mxu0 0
    %1414 = vmatpush1.bf16.msra.mxu0 0
    %1415 = vmatprep.subr.bf16.mxu0 0
    %1416 = vmatpush1.bf16.msra.mxu0 0
    %1417 = vmatprep.subr.bf16.mxu0 0
    %1418 = vmatpush1.bf16.msra.mxu0 0
    %1419 = vmatprep.subr.bf16.mxu0 0
    %1420 = vmatpush1.bf16.msra.mxu0 0
    %1421 = vmatprep.subr.bf16.mxu0 0
    %1422 = vmatpush1.bf16.msra.mxu0 0
    %1423 = vmatprep.subr.bf16.mxu0 %v1083
    %1424 = vmatpush1.bf16.msra.mxu0 %v1082
    %1425 = vmatprep.subr.bf16.mxu0 0
    %1426 = vmatpush2.bf16.msra.mxu0 0
    %1427 = vmatprep.subr.bf16.mxu0 0
    %1428 = vmatpush2.bf16.msra.mxu0 0
    %1429 = vmatprep.subr.bf16.mxu0 0
    %1430 = vmatpush2.bf16.msra.mxu0 0
    %1431 = vmatprep.subr.bf16.mxu0 0
    %1432 = vmatpush2.bf16.msra.mxu0 0
    %1433 = vmatprep.subr.bf16.mxu0 0
    %1434 = vmatpush2.bf16.msra.mxu0 0
    %1435 = vmatprep.subr.bf16.mxu0 0
    %1436 = vmatpush2.bf16.msra.mxu0 0
    %1437 = vmatprep.subr.bf16.mxu0 0
    %1438 = vmatpush2.bf16.msra.mxu0 0
    %1439 = vmatprep.subr.bf16.mxu0 0
    %1440 = vmatpush2.bf16.msra.mxu0 0
    %1441 = vmatprep.mubr.bf16.mxu0 0
    %1442 = vmatmul.mubr.bf16.gmra.mxu0 %v1284
    %v1443 = vpop.f32.mrf.mxu0
    %v1444 = vadd.f32 %v1403, %v1443
    %v1445 = vpop.f32.mrf.mxu0
    %v1446 = vadd.f32 %v1405, %v1445
    %v1447 = vpop.f32.mrf.mxu0
    %v1448 = vpop.f32.mrf.mxu0
    %1449 = vdwg.mxu0
    %1450 = vmatprep.subr.bf16.mxu0 %v921
    %1451 = vmatpush1.bf16.msra.mxu0 %v920
    %1452 = vmatprep.subr.bf16.mxu0 %v917
    %1453 = vmatpush1.bf16.msra.mxu0 %v916
    %1454 = vmatprep.subr.bf16.mxu0 %v913
    %1455 = vmatpush1.bf16.msra.mxu0 %v912
    %1456 = vmatprep.subr.bf16.mxu0 %v909
    %1457 = vmatpush1.bf16.msra.mxu0 %v908
    %1458 = vmatprep.subr.bf16.mxu0 %v905
    %1459 = vmatpush1.bf16.msra.mxu0 %v904
    %1460 = vmatprep.subr.bf16.mxu0 %v901
    %1461 = vmatpush1.bf16.msra.mxu0 %v900
    %1462 = vmatprep.subr.bf16.mxu0 %v897
    %1463 = vmatpush1.bf16.msra.mxu0 %v896
    %1464 = vmatprep.subr.bf16.mxu0 %v893
    %1465 = vmatpush1.bf16.msra.mxu0 %v892
    %1466 = vmatprep.subr.bf16.mxu0 %v953
    %1467 = vmatpush2.bf16.msra.mxu0 %v952
    %1468 = vmatprep.subr.bf16.mxu0 %v949
    %1469 = vmatpush2.bf16.msra.mxu0 %v948
    %1470 = vmatprep.subr.bf16.mxu0 %v945
    %1471 = vmatpush2.bf16.msra.mxu0 %v944
    %1472 = vmatprep.subr.bf16.mxu0 %v941
    %1473 = vmatpush2.bf16.msra.mxu0 %v940
    %1474 = vmatprep.subr.bf16.mxu0 %v937
    %1475 = vmatpush2.bf16.msra.mxu0 %v936
    %1476 = vmatprep.subr.bf16.mxu0 %v933
    %1477 = vmatpush2.bf16.msra.mxu0 %v932
    %1478 = vmatprep.subr.bf16.mxu0 %v929
    %1479 = vmatpush2.bf16.msra.mxu0 %v928
    %1480 = vmatprep.subr.bf16.mxu0 %v925
    %1481 = vmatpush2.bf16.msra.mxu0 %v924
    %1482 = vmatprep.mubr.bf16.mxu0 %v290
    %1483 = vmatmul.mubr.bf16.gmra.mxu0 %v289
    %v1484 = vpop.f32.mrf.mxu0
    %v1485 = vadd.f32 %v269, %v1484
    %v1486 = vpop.f32.mrf.mxu0
    %v1487 = vadd.f32 %v273, %v1486
    %v1488 = vpop.f32.mrf.mxu0
    %v1489 = vpop.f32.mrf.mxu0
    %1490 = vdwg.mxu0
    %1491 = vmatprep.subr.bf16.mxu0 %v985
    %1492 = vmatpush1.bf16.msra.mxu0 %v984
    %1493 = vmatprep.subr.bf16.mxu0 %v981
    %1494 = vmatpush1.bf16.msra.mxu0 %v980
    %1495 = vmatprep.subr.bf16.mxu0 %v977
    %1496 = vmatpush1.bf16.msra.mxu0 %v976
    %1497 = vmatprep.subr.bf16.mxu0 %v973
    %1498 = vmatpush1.bf16.msra.mxu0 %v972
    %1499 = vmatprep.subr.bf16.mxu0 %v969
    %1500 = vmatpush1.bf16.msra.mxu0 %v968
    %1501 = vmatprep.subr.bf16.mxu0 %v965
    %1502 = vmatpush1.bf16.msra.mxu0 %v964
    %1503 = vmatprep.subr.bf16.mxu0 %v961
    %1504 = vmatpush1.bf16.msra.mxu0 %v960
    %1505 = vmatprep.subr.bf16.mxu0 %v957
    %1506 = vmatpush1.bf16.msra.mxu0 %v956
    %1507 = vmatprep.subr.bf16.mxu0 %v1017
    %1508 = vmatpush2.bf16.msra.mxu0 %v1016
    %1509 = vmatprep.subr.bf16.mxu0 %v1013
    %1510 = vmatpush2.bf16.msra.mxu0 %v1012
    %1511 = vmatprep.subr.bf16.mxu0 %v1009
    %1512 = vmatpush2.bf16.msra.mxu0 %v1008
    %1513 = vmatprep.subr.bf16.mxu0 %v1005
    %1514 = vmatpush2.bf16.msra.mxu0 %v1004
    %1515 = vmatprep.subr.bf16.mxu0 %v1001
    %1516 = vmatpush2.bf16.msra.mxu0 %v1000
    %1517 = vmatprep.subr.bf16.mxu0 %v997
    %1518 = vmatpush2.bf16.msra.mxu0 %v996
    %1519 = vmatprep.subr.bf16.mxu0 %v993
    %1520 = vmatpush2.bf16.msra.mxu0 %v992
    %1521 = vmatprep.subr.bf16.mxu0 %v989
    %1522 = vmatpush2.bf16.msra.mxu0 %v988
    %1523 = vmatprep.mubr.bf16.mxu0 %v292
    %1524 = vmatmul.mubr.bf16.gmra.mxu0 %v291
    %v1525 = vpop.f32.mrf.mxu0
    %v1526 = vadd.f32 %v1485, %v1525
    %v1527 = vpop.f32.mrf.mxu0
    %v1528 = vadd.f32 %v1487, %v1527
    %v1529 = vpop.f32.mrf.mxu0
    %v1530 = vpop.f32.mrf.mxu0
    %1531 = vdwg.mxu0
    %1532 = vmatprep.subr.bf16.mxu0 %v1049
    %1533 = vmatpush1.bf16.msra.mxu0 %v1048
    %1534 = vmatprep.subr.bf16.mxu0 %v1045
    %1535 = vmatpush1.bf16.msra.mxu0 %v1044
    %1536 = vmatprep.subr.bf16.mxu0 %v1041
    %1537 = vmatpush1.bf16.msra.mxu0 %v1040
    %1538 = vmatprep.subr.bf16.mxu0 %v1037
    %1539 = vmatpush1.bf16.msra.mxu0 %v1036
    %1540 = vmatprep.subr.bf16.mxu0 %v1033
    %1541 = vmatpush1.bf16.msra.mxu0 %v1032
    %1542 = vmatprep.subr.bf16.mxu0 %v1029
    %1543 = vmatpush1.bf16.msra.mxu0 %v1028
    %1544 = vmatprep.subr.bf16.mxu0 %v1025
    %1545 = vmatpush1.bf16.msra.mxu0 %v1024
    %1546 = vmatprep.subr.bf16.mxu0 %v1021
    %1547 = vmatpush1.bf16.msra.mxu0 %v1020
    %1548 = vmatprep.subr.bf16.mxu0 %v1081
    %1549 = vmatpush2.bf16.msra.mxu0 %v1080
    %1550 = vmatprep.subr.bf16.mxu0 %v1077
    %1551 = vmatpush2.bf16.msra.mxu0 %v1076
    %1552 = vmatprep.subr.bf16.mxu0 %v1073
    %1553 = vmatpush2.bf16.msra.mxu0 %v1072
    %1554 = vmatprep.subr.bf16.mxu0 %v1069
    %1555 = vmatpush2.bf16.msra.mxu0 %v1068
    %1556 = vmatprep.subr.bf16.mxu0 %v1065
    %1557 = vmatpush2.bf16.msra.mxu0 %v1064
    %1558 = vmatprep.subr.bf16.mxu0 %v1061
    %1559 = vmatpush2.bf16.msra.mxu0 %v1060
    %1560 = vmatprep.subr.bf16.mxu0 %v1057
    %1561 = vmatpush2.bf16.msra.mxu0 %v1056
    %1562 = vmatprep.subr.bf16.mxu0 %v1053
    %1563 = vmatpush2.bf16.msra.mxu0 %v1052
    %1564 = vmatprep.mubr.bf16.mxu0 %v294
    %1565 = vmatmul.mubr.bf16.gmra.mxu0 %v293
    %v1566 = vpop.f32.mrf.mxu0
    %v1567 = vadd.f32 %v1526, %v1566
    %v1568 = vpop.f32.mrf.mxu0
    %v1569 = vadd.f32 %v1528, %v1568
    %v1570 = vpop.f32.mrf.mxu0
    %v1571 = vpop.f32.mrf.mxu0
    %1572 = vdwg.mxu0
    %1573 = vmatprep.subr.bf16.mxu0 0
    %1574 = vmatpush1.bf16.msra.mxu0 0
    %1575 = vmatprep.subr.bf16.mxu0 0
    %1576 = vmatpush1.bf16.msra.mxu0 0
    %1577 = vmatprep.subr.bf16.mxu0 0
    %1578 = vmatpush1.bf16.msra.mxu0 0
    %1579 = vmatprep.subr.bf16.mxu0 0
    %1580 = vmatpush1.bf16.msra.mxu0 0
    %1581 = vmatprep.subr.bf16.mxu0 0
    %1582 = vmatpush1.bf16.msra.mxu0 0
    %1583 = vmatprep.subr.bf16.mxu0 0
    %1584 = vmatpush1.bf16.msra.mxu0 0
    %1585 = vmatprep.subr.bf16.mxu0 0
    %1586 = vmatpush1.bf16.msra.mxu0 0
    %1587 = vmatprep.subr.bf16.mxu0 %v1085
    %1588 = vmatpush1.bf16.msra.mxu0 %v1084
    %1589 = vmatprep.subr.bf16.mxu0 0
    %1590 = vmatpush2.bf16.msra.mxu0 0
    %1591 = vmatprep.subr.bf16.mxu0 0
    %1592 = vmatpush2.bf16.msra.mxu0 0
    %1593 = vmatprep.subr.bf16.mxu0 0
    %1594 = vmatpush2.bf16.msra.mxu0 0
    %1595 = vmatprep.subr.bf16.mxu0 0
    %1596 = vmatpush2.bf16.msra.mxu0 0
    %1597 = vmatprep.subr.bf16.mxu0 0
    %1598 = vmatpush2.bf16.msra.mxu0 0
    %1599 = vmatprep.subr.bf16.mxu0 0
    %1600 = vmatpush2.bf16.msra.mxu0 0
    %1601 = vmatprep.subr.bf16.mxu0 0
    %1602 = vmatpush2.bf16.msra.mxu0 0
    %1603 = vmatprep.subr.bf16.mxu0 0
    %1604 = vmatpush2.bf16.msra.mxu0 0
    %1605 = vmatprep.mubr.bf16.mxu0 0
    %1606 = vmatmul.mubr.bf16.gmra.mxu0 %v1284
    %v1607 = vpop.f32.mrf.mxu0
    %v1608 = vadd.f32 %v1567, %v1607
    %v1609 = vpop.f32.mrf.mxu0
    %v1610 = vadd.f32 %v1569, %v1609
    %v1611 = vpop.f32.mrf.mxu0
    %v1612 = vpop.f32.mrf.mxu0
    %1613 = vdwg.mxu0
    %v1614 = vmax.f32 %v1444, 0.0
    %v1615 = vmax.f32 %v1446, 0.0
    %v1616 = vmax.f32 %v1608, 0.0
    %v1617 = vmax.f32 %v1610, 0.0
    %v1618 = vpack.c.bf16 %v1614, %v1614
    %v1619 = vpack.c.bf16 %v1615, %v1615
    %v1620 = vpack.c.bf16 %v1616, %v1616
    %v1621 = vpack.c.bf16 %v1617, %v1617
    %v1622 = vld [vmem:[#allocation5] sm:$0xff]
    %v1623 = vld [vmem:[#allocation5 + $0x8] sm:$0xff]
    %v1624 = vld [vmem:[#allocation5 + $0x10] sm:$0xff]
    %v1625 = vld [vmem:[#allocation5 + $0x18] sm:$0xff]
    %v1626 = vld [vmem:[#allocation5 + $0x20] sm:$0xff]
    %v1627 = vld [vmem:[#allocation5 + $0x28] sm:$0xff]
    %v1628 = vld [vmem:[#allocation5 + $0x30] sm:$0xff]
    %v1629 = vld [vmem:[#allocation5 + $0x38] sm:$0xff]
    %v1630 = vld [vmem:[#allocation5 + $0x40] sm:$0xff]
    %v1631 = vld [vmem:[#allocation5 + $0x48] sm:$0xff]
    %v1632 = vld [vmem:[#allocation5 + $0x50] sm:$0xff]
    %v1633 = vld [vmem:[#allocation5 + $0x58] sm:$0xff]
    %v1634 = vld [vmem:[#allocation5 + $0x60] sm:$0xff]
    %v1635 = vld [vmem:[#allocation5 + $0x68] sm:$0xff]
    %v1636 = vld [vmem:[#allocation5 + $0x70] sm:$0xff]
    %v1637 = vld [vmem:[#allocation5 + $0x78] sm:$0xff]
    %v1638 = vld [vmem:[#allocation5 + $0x80] sm:$0xff]
    %v1639 = vld [vmem:[#allocation5 + $0x88] sm:$0xff]
    %v1640 = vld [vmem:[#allocation5 + $0x90] sm:$0xff]
    %v1641 = vld [vmem:[#allocation5 + $0x98] sm:$0xff]
    %v1642 = vld [vmem:[#allocation5 + $0xa0] sm:$0xff]
    %v1643 = vld [vmem:[#allocation5 + $0xa8] sm:$0xff]
    %v1644 = vld [vmem:[#allocation5 + $0xb0] sm:$0xff]
    %v1645 = vld [vmem:[#allocation5 + $0xb8] sm:$0xff]
    %v1646 = vld [vmem:[#allocation5 + $0xc0] sm:$0xff]
    %v1647 = vld [vmem:[#allocation5 + $0xc8] sm:$0xff]
    %v1648 = vld [vmem:[#allocation5 + $0xd0] sm:$0xff]
    %v1649 = vld [vmem:[#allocation5 + $0xd8] sm:$0xff]
    %v1650 = vld [vmem:[#allocation5 + $0xe0] sm:$0xff]
    %v1651 = vld [vmem:[#allocation5 + $0xe8] sm:$0xff]
    %v1652 = vld [vmem:[#allocation5 + $0xf0] sm:$0xff]
    %v1653 = vld [vmem:[#allocation5 + $0xf8] sm:$0xff]
    %v1654 = vld [vmem:[#allocation5 + $0x100] sm:$0xff]
    %v1655 = vld [vmem:[#allocation5 + $0x108] sm:$0xff]
    %v1656 = vld [vmem:[#allocation5 + $0x110] sm:$0xff]
    %v1657 = vld [vmem:[#allocation5 + $0x118] sm:$0xff]
    %v1658 = vld [vmem:[#allocation5 + $0x120] sm:$0xff]
    %v1659 = vld [vmem:[#allocation5 + $0x128] sm:$0xff]
    %v1660 = vld [vmem:[#allocation5 + $0x130] sm:$0xff]
    %v1661 = vld [vmem:[#allocation5 + $0x138] sm:$0xff]
    %v1662 = vld [vmem:[#allocation5 + $0x140] sm:$0xff]
    %v1663 = vld [vmem:[#allocation5 + $0x148] sm:$0xff]
    %v1664 = vld [vmem:[#allocation5 + $0x150] sm:$0xff]
    %v1665 = vld [vmem:[#allocation5 + $0x158] sm:$0xff]
    %v1666 = vld [vmem:[#allocation5 + $0x160] sm:$0xff]
    %v1667 = vld [vmem:[#allocation5 + $0x168] sm:$0xff]
    %v1668 = vld [vmem:[#allocation5 + $0x170] sm:$0xff]
    %v1669 = vld [vmem:[#allocation5 + $0x178] sm:$0xff]
    %v1670 = vld [vmem:[#allocation5 + $0x180] sm:$0xff]
    %v1671 = vld [vmem:[#allocation5 + $0x188] sm:$0xff]
    %v1672 = vld [vmem:[#allocation5 + $0x190] sm:$0xff]
    %v1673 = vld [vmem:[#allocation5 + $0x198] sm:$0xff]
    %v1674 = vld [vmem:[#allocation5 + $0x1a0] sm:$0xff]
    %v1675 = vld [vmem:[#allocation5 + $0x1a8] sm:$0xff]
    %v1676 = vld [vmem:[#allocation5 + $0x1b0] sm:$0xff]
    %v1677 = vld [vmem:[#allocation5 + $0x1b8] sm:$0xff]
    %v1678 = vld [vmem:[#allocation5 + $0x1c0] sm:$0xff]
    %v1679 = vld [vmem:[#allocation5 + $0x1c8] sm:$0xff]
    %v1680 = vld [vmem:[#allocation5 + $0x1d0] sm:$0xff]
    %v1681 = vld [vmem:[#allocation5 + $0x1d8] sm:$0xff]
    %v1682 = vld [vmem:[#allocation5 + $0x1e0] sm:$0xff]
    %v1683 = vld [vmem:[#allocation5 + $0x1e8] sm:$0xff]
    %v1684 = vld [vmem:[#allocation5 + $0x1f0] sm:$0xff]
    %v1685 = vld [vmem:[#allocation5 + $0x1f8] sm:$0xff]
    %v1686 = vld [vmem:[%s4] sm:$0x3]
    %v1688 = vlaneseq
    %v1689 = vshrl.u32 %v1688, 7
    %v1690 = vsub.s32 0, %v1689
    %v1691 = vrot.slane %v1686, %v1690
    %v1692 = vlaneseq
    %v1693 = vshrl.u32 %v1692, 7
    %v1694 = vsub.s32 1, %v1693
    %v1695 = vrot.slane %v1686, %v1694
    %v1762 = vunpack.c.l.b16 %v1622
    %v1763 = vunpack.c.h.b16 %v1622
    %v1764 = vunpack.c.l.b16 %v1623
    %v1765 = vunpack.c.h.b16 %v1623
    %v1766 = vunpack.c.l.b16 %v1624
    %v1767 = vunpack.c.h.b16 %v1624
    %v1768 = vunpack.c.l.b16 %v1625
    %v1769 = vunpack.c.h.b16 %v1625
    %v1770 = vunpack.c.l.b16 %v1626
    %v1771 = vunpack.c.h.b16 %v1626
    %v1772 = vunpack.c.l.b16 %v1627
    %v1773 = vunpack.c.h.b16 %v1627
    %v1774 = vunpack.c.l.b16 %v1628
    %v1775 = vunpack.c.h.b16 %v1628
    %v1776 = vunpack.c.l.b16 %v1629
    %v1777 = vunpack.c.h.b16 %v1629
    %v1778 = vunpack.c.l.b16 %v1630
    %v1779 = vunpack.c.h.b16 %v1630
    %v1780 = vunpack.c.l.b16 %v1631
    %v1781 = vunpack.c.h.b16 %v1631
    %v1782 = vunpack.c.l.b16 %v1632
    %v1783 = vunpack.c.h.b16 %v1632
    %v1784 = vunpack.c.l.b16 %v1633
    %v1785 = vunpack.c.h.b16 %v1633
    %v1786 = vunpack.c.l.b16 %v1634
    %v1787 = vunpack.c.h.b16 %v1634
    %v1788 = vunpack.c.l.b16 %v1635
    %v1789 = vunpack.c.h.b16 %v1635
    %v1790 = vunpack.c.l.b16 %v1636
    %v1791 = vunpack.c.h.b16 %v1636
    %v1792 = vunpack.c.l.b16 %v1637
    %v1793 = vunpack.c.h.b16 %v1637
    %v1794 = vunpack.c.l.b16 %v1638
    %v1795 = vunpack.c.h.b16 %v1638
    %v1796 = vunpack.c.l.b16 %v1639
    %v1797 = vunpack.c.h.b16 %v1639
    %v1798 = vunpack.c.l.b16 %v1640
    %v1799 = vunpack.c.h.b16 %v1640
    %v1800 = vunpack.c.l.b16 %v1641
    %v1801 = vunpack.c.h.b16 %v1641
    %v1802 = vunpack.c.l.b16 %v1642
    %v1803 = vunpack.c.h.b16 %v1642
    %v1804 = vunpack.c.l.b16 %v1643
    %v1805 = vunpack.c.h.b16 %v1643
    %v1806 = vunpack.c.l.b16 %v1644
    %v1807 = vunpack.c.h.b16 %v1644
    %v1808 = vunpack.c.l.b16 %v1645
    %v1809 = vunpack.c.h.b16 %v1645
    %v1810 = vunpack.c.l.b16 %v1646
    %v1811 = vunpack.c.h.b16 %v1646
    %v1812 = vunpack.c.l.b16 %v1647
    %v1813 = vunpack.c.h.b16 %v1647
    %v1814 = vunpack.c.l.b16 %v1648
    %v1815 = vunpack.c.h.b16 %v1648
    %v1816 = vunpack.c.l.b16 %v1649
    %v1817 = vunpack.c.h.b16 %v1649
    %v1818 = vunpack.c.l.b16 %v1650
    %v1819 = vunpack.c.h.b16 %v1650
    %v1820 = vunpack.c.l.b16 %v1651
    %v1821 = vunpack.c.h.b16 %v1651
    %v1822 = vunpack.c.l.b16 %v1652
    %v1823 = vunpack.c.h.b16 %v1652
    %v1824 = vunpack.c.l.b16 %v1653
    %v1825 = vunpack.c.h.b16 %v1653
    %v1826 = vunpack.c.l.b16 %v1654
    %v1827 = vunpack.c.h.b16 %v1654
    %v1828 = vunpack.c.l.b16 %v1655
    %v1829 = vunpack.c.h.b16 %v1655
    %v1830 = vunpack.c.l.b16 %v1656
    %v1831 = vunpack.c.h.b16 %v1656
    %v1832 = vunpack.c.l.b16 %v1657
    %v1833 = vunpack.c.h.b16 %v1657
    %v1834 = vunpack.c.l.b16 %v1658
    %v1835 = vunpack.c.h.b16 %v1658
    %v1836 = vunpack.c.l.b16 %v1659
    %v1837 = vunpack.c.h.b16 %v1659
    %v1838 = vunpack.c.l.b16 %v1660
    %v1839 = vunpack.c.h.b16 %v1660
    %v1840 = vunpack.c.l.b16 %v1661
    %v1841 = vunpack.c.h.b16 %v1661
    %v1842 = vunpack.c.l.b16 %v1662
    %v1843 = vunpack.c.h.b16 %v1662
    %v1844 = vunpack.c.l.b16 %v1663
    %v1845 = vunpack.c.h.b16 %v1663
    %v1846 = vunpack.c.l.b16 %v1664
    %v1847 = vunpack.c.h.b16 %v1664
    %v1848 = vunpack.c.l.b16 %v1665
    %v1849 = vunpack.c.h.b16 %v1665
    %v1850 = vunpack.c.l.b16 %v1666
    %v1851 = vunpack.c.h.b16 %v1666
    %v1852 = vunpack.c.l.b16 %v1667
    %v1853 = vunpack.c.h.b16 %v1667
    %v1854 = vunpack.c.l.b16 %v1668
    %v1855 = vunpack.c.h.b16 %v1668
    %v1856 = vunpack.c.l.b16 %v1669
    %v1857 = vunpack.c.h.b16 %v1669
    %v1858 = vunpack.c.l.b16 %v1670
    %v1859 = vunpack.c.h.b16 %v1670
    %v1860 = vunpack.c.l.b16 %v1671
    %v1861 = vunpack.c.h.b16 %v1671
    %v1862 = vunpack.c.l.b16 %v1672
    %v1863 = vunpack.c.h.b16 %v1672
    %v1864 = vunpack.c.l.b16 %v1673
    %v1865 = vunpack.c.h.b16 %v1673
    %v1866 = vunpack.c.l.b16 %v1674
    %v1867 = vunpack.c.h.b16 %v1674
    %v1868 = vunpack.c.l.b16 %v1675
    %v1869 = vunpack.c.h.b16 %v1675
    %v1870 = vunpack.c.l.b16 %v1676
    %v1871 = vunpack.c.h.b16 %v1676
    %v1872 = vunpack.c.l.b16 %v1677
    %v1873 = vunpack.c.h.b16 %v1677
    %v1874 = vunpack.c.l.b16 %v1678
    %v1875 = vunpack.c.h.b16 %v1678
    %v1876 = vunpack.c.l.b16 %v1679
    %v1877 = vunpack.c.h.b16 %v1679
    %v1878 = vunpack.c.l.b16 %v1680
    %v1879 = vunpack.c.h.b16 %v1680
    %v1880 = vunpack.c.l.b16 %v1681
    %v1881 = vunpack.c.h.b16 %v1681
    %v1882 = vunpack.c.l.b16 %v1682
    %v1883 = vunpack.c.h.b16 %v1682
    %v1884 = vunpack.c.l.b16 %v1683
    %v1885 = vunpack.c.h.b16 %v1683
    %v1886 = vunpack.c.l.b16 %v1684
    %v1887 = vunpack.c.h.b16 %v1684
    %v1888 = vunpack.c.l.b16 %v1685
    %v1889 = vunpack.c.h.b16 %v1685
    %v1890 = vpack.c.b16 %v1764, %v1762
    %v1891 = vpack.c.b16 %v1765, %v1763
    %v1892 = vpack.c.b16 %v1768, %v1766
    %v1893 = vpack.c.b16 %v1769, %v1767
    %v1894 = vpack.c.b16 %v1772, %v1770
    %v1895 = vpack.c.b16 %v1773, %v1771
    %v1896 = vpack.c.b16 %v1776, %v1774
    %v1897 = vpack.c.b16 %v1777, %v1775
    %v1898 = vpack.c.b16 %v1780, %v1778
    %v1899 = vpack.c.b16 %v1781, %v1779
    %v1900 = vpack.c.b16 %v1784, %v1782
    %v1901 = vpack.c.b16 %v1785, %v1783
    %v1902 = vpack.c.b16 %v1788, %v1786
    %v1903 = vpack.c.b16 %v1789, %v1787
    %v1904 = vpack.c.b16 %v1792, %v1790
    %v1905 = vpack.c.b16 %v1793, %v1791
    %v1906 = vpack.c.b16 %v1796, %v1794
    %v1907 = vpack.c.b16 %v1797, %v1795
    %v1908 = vpack.c.b16 %v1800, %v1798
    %v1909 = vpack.c.b16 %v1801, %v1799
    %v1910 = vpack.c.b16 %v1804, %v1802
    %v1911 = vpack.c.b16 %v1805, %v1803
    %v1912 = vpack.c.b16 %v1808, %v1806
    %v1913 = vpack.c.b16 %v1809, %v1807
    %v1914 = vpack.c.b16 %v1812, %v1810
    %v1915 = vpack.c.b16 %v1813, %v1811
    %v1916 = vpack.c.b16 %v1816, %v1814
    %v1917 = vpack.c.b16 %v1817, %v1815
    %v1918 = vpack.c.b16 %v1820, %v1818
    %v1919 = vpack.c.b16 %v1821, %v1819
    %v1920 = vpack.c.b16 %v1824, %v1822
    %v1921 = vpack.c.b16 %v1825, %v1823
    %v1922 = vpack.c.b16 %v1828, %v1826
    %v1923 = vpack.c.b16 %v1829, %v1827
    %v1924 = vpack.c.b16 %v1832, %v1830
    %v1925 = vpack.c.b16 %v1833, %v1831
    %v1926 = vpack.c.b16 %v1836, %v1834
    %v1927 = vpack.c.b16 %v1837, %v1835
    %v1928 = vpack.c.b16 %v1840, %v1838
    %v1929 = vpack.c.b16 %v1841, %v1839
    %v1930 = vpack.c.b16 %v1844, %v1842
    %v1931 = vpack.c.b16 %v1845, %v1843
    %v1932 = vpack.c.b16 %v1848, %v1846
    %v1933 = vpack.c.b16 %v1849, %v1847
    %v1934 = vpack.c.b16 %v1852, %v1850
    %v1935 = vpack.c.b16 %v1853, %v1851
    %v1936 = vpack.c.b16 %v1856, %v1854
    %v1937 = vpack.c.b16 %v1857, %v1855
    %v1938 = vpack.c.b16 %v1860, %v1858
    %v1939 = vpack.c.b16 %v1861, %v1859
    %v1940 = vpack.c.b16 %v1864, %v1862
    %v1941 = vpack.c.b16 %v1865, %v1863
    %v1942 = vpack.c.b16 %v1868, %v1866
    %v1943 = vpack.c.b16 %v1869, %v1867
    %v1944 = vpack.c.b16 %v1872, %v1870
    %v1945 = vpack.c.b16 %v1873, %v1871
    %v1946 = vpack.c.b16 %v1876, %v1874
    %v1947 = vpack.c.b16 %v1877, %v1875
    %v1948 = vpack.c.b16 %v1880, %v1878
    %v1949 = vpack.c.b16 %v1881, %v1879
    %v1950 = vpack.c.b16 %v1884, %v1882
    %v1951 = vpack.c.b16 %v1885, %v1883
    %v1952 = vpack.c.b16 %v1888, %v1886
    %v1953 = vpack.c.b16 %v1889, %v1887
    %2018 = vmatprep.subr.bf16.mxu0 %v1905
    %2019 = vmatpush1.bf16.msra.mxu0 %v1904
    %2020 = vmatprep.subr.bf16.mxu0 %v1903
    %2021 = vmatpush1.bf16.msra.mxu0 %v1902
    %2022 = vmatprep.subr.bf16.mxu0 %v1901
    %2023 = vmatpush1.bf16.msra.mxu0 %v1900
    %2024 = vmatprep.subr.bf16.mxu0 %v1899
    %2025 = vmatpush1.bf16.msra.mxu0 %v1898
    %2026 = vmatprep.subr.bf16.mxu0 %v1897
    %2027 = vmatpush1.bf16.msra.mxu0 %v1896
    %2028 = vmatprep.subr.bf16.mxu0 %v1895
    %2029 = vmatpush1.bf16.msra.mxu0 %v1894
    %2030 = vmatprep.subr.bf16.mxu0 %v1893
    %2031 = vmatpush1.bf16.msra.mxu0 %v1892
    %2032 = vmatprep.subr.bf16.mxu0 %v1891
    %2033 = vmatpush1.bf16.msra.mxu0 %v1890
    %2034 = vmatprep.subr.bf16.mxu0 %v1921
    %2035 = vmatpush2.bf16.msra.mxu0 %v1920
    %2036 = vmatprep.subr.bf16.mxu0 %v1919
    %2037 = vmatpush2.bf16.msra.mxu0 %v1918
    %2038 = vmatprep.subr.bf16.mxu0 %v1917
    %2039 = vmatpush2.bf16.msra.mxu0 %v1916
    %2040 = vmatprep.subr.bf16.mxu0 %v1915
    %2041 = vmatpush2.bf16.msra.mxu0 %v1914
    %2042 = vmatprep.subr.bf16.mxu0 %v1913
    %2043 = vmatpush2.bf16.msra.mxu0 %v1912
    %2044 = vmatprep.subr.bf16.mxu0 %v1911
    %2045 = vmatpush2.bf16.msra.mxu0 %v1910
    %2046 = vmatprep.subr.bf16.mxu0 %v1909
    %2047 = vmatpush2.bf16.msra.mxu0 %v1908
    %2048 = vmatprep.subr.bf16.mxu0 %v1907
    %2049 = vmatpush2.bf16.msra.mxu0 %v1906
    %2050 = vmatprep.mubr.bf16.mxu0 %v1619
    %2051 = vmatmul.mubr.bf16.gmra.mxu0 %v1618
    %v2052 = vpop.f32.mrf.mxu0
    %v2053 = vadd.f32 %v1691, %v2052
    %v2054 = vpop.f32.mrf.mxu0
    %v2055 = vadd.f32 %v1695, %v2054
    %v2056 = vpop.f32.mrf.mxu0
    %v2057 = vpop.f32.mrf.mxu0
    %2058 = vdwg.mxu0
    %2059 = vmatprep.subr.bf16.mxu0 %v1937
    %2060 = vmatpush1.bf16.msra.mxu0 %v1936
    %2061 = vmatprep.subr.bf16.mxu0 %v1935
    %2062 = vmatpush1.bf16.msra.mxu0 %v1934
    %2063 = vmatprep.subr.bf16.mxu0 %v1933
    %2064 = vmatpush1.bf16.msra.mxu0 %v1932
    %2065 = vmatprep.subr.bf16.mxu0 %v1931
    %2066 = vmatpush1.bf16.msra.mxu0 %v1930
    %2067 = vmatprep.subr.bf16.mxu0 %v1929
    %2068 = vmatpush1.bf16.msra.mxu0 %v1928
    %2069 = vmatprep.subr.bf16.mxu0 %v1927
    %2070 = vmatpush1.bf16.msra.mxu0 %v1926
    %2071 = vmatprep.subr.bf16.mxu0 %v1925
    %2072 = vmatpush1.bf16.msra.mxu0 %v1924
    %2073 = vmatprep.subr.bf16.mxu0 %v1923
    %2074 = vmatpush1.bf16.msra.mxu0 %v1922
    %2075 = vmatprep.subr.bf16.mxu0 %v1953
    %2076 = vmatpush2.bf16.msra.mxu0 %v1952
    %2077 = vmatprep.subr.bf16.mxu0 %v1951
    %2078 = vmatpush2.bf16.msra.mxu0 %v1950
    %2079 = vmatprep.subr.bf16.mxu0 %v1949
    %2080 = vmatpush2.bf16.msra.mxu0 %v1948
    %2081 = vmatprep.subr.bf16.mxu0 %v1947
    %2082 = vmatpush2.bf16.msra.mxu0 %v1946
    %2083 = vmatprep.subr.bf16.mxu0 %v1945
    %2084 = vmatpush2.bf16.msra.mxu0 %v1944
    %2085 = vmatprep.subr.bf16.mxu0 %v1943
    %2086 = vmatpush2.bf16.msra.mxu0 %v1942
    %2087 = vmatprep.subr.bf16.mxu0 %v1941
    %2088 = vmatpush2.bf16.msra.mxu0 %v1940
    %2089 = vmatprep.subr.bf16.mxu0 %v1939
    %2090 = vmatpush2.bf16.msra.mxu0 %v1938
    %2091 = vmatprep.mubr.bf16.mxu0 %v1621
    %2092 = vmatmul.mubr.bf16.gmra.mxu0 %v1620
    %v2093 = vpop.f32.mrf.mxu0
    %v2094 = vadd.f32 %v2053, %v2093
    %v2095 = vpop.f32.mrf.mxu0
    %v2096 = vadd.f32 %v2055, %v2095
    %v2097 = vpop.f32.mrf.mxu0
    %v2098 = vpop.f32.mrf.mxu0
    %2099 = vdwg.mxu0
    %v2100 = vmax.f32 %v2094, 0.0
    %v2101 = vmax.f32 %v2096, 0.0
    %v2102 = vpack.c.bf16 %v2100, %v2100
    %v2103 = vpack.c.bf16 %v2101, %v2101
    %v2104 = vld [vmem:[%s5] sm:$0xf]
    %v2105 = vld [vmem:[%s5 + $0x4] sm:$0xf]
    %v2106 = vld [vmem:[%s5 + $0x8] sm:$0xf]
    %v2107 = vld [vmem:[%s5 + $0xc] sm:$0xf]
    %v2108 = vld [vmem:[%s5 + $0x10] sm:$0xf]
    %v2109 = vld [vmem:[%s5 + $0x14] sm:$0xf]
    %v2110 = vld [vmem:[%s5 + $0x18] sm:$0xf]
    %v2111 = vld [vmem:[%s5 + $0x1c] sm:$0xf]
    %v2112 = vld [vmem:[%s5 + $0x20] sm:$0xf]
    %v2113 = vld [vmem:[%s5 + $0x24] sm:$0xf]
    %v2114 = vld [vmem:[%s5 + $0x28] sm:$0xf]
    %v2115 = vld [vmem:[%s5 + $0x2c] sm:$0xf]
    %v2116 = vld [vmem:[%s5 + $0x30] sm:$0xf]
    %v2117 = vld [vmem:[%s5 + $0x34] sm:$0xf]
    %v2118 = vld [vmem:[%s5 + $0x38] sm:$0xf]
    %v2119 = vld [vmem:[%s5 + $0x3c] sm:$0xf]
    %v2120 = vld [vmem:[%s5 + $0x40] sm:$0xf]
    %v2121 = vld [vmem:[%s5 + $0x44] sm:$0xf]
    %v2122 = vld [vmem:[%s5 + $0x48] sm:$0xf]
    %v2123 = vld [vmem:[%s5 + $0x4c] sm:$0xf]
    %v2124 = vld [vmem:[%s5 + $0x50] sm:$0xf]
    %v2125 = vld [vmem:[%s5 + $0x54] sm:$0xf]
    %v2126 = vld [vmem:[%s5 + $0x58] sm:$0xf]
    %v2127 = vld [vmem:[%s5 + $0x5c] sm:$0xf]
    %v2128 = vld [vmem:[%s5 + $0x60] sm:$0xf]
    %v2129 = vld [vmem:[%s5 + $0x64] sm:$0xf]
    %v2130 = vld [vmem:[%s5 + $0x68] sm:$0xf]
    %v2131 = vld [vmem:[%s5 + $0x6c] sm:$0xf]
    %v2132 = vld [vmem:[%s5 + $0x70] sm:$0xf]
    %v2133 = vld [vmem:[%s5 + $0x74] sm:$0xf]
    %v2134 = vld [vmem:[%s5 + $0x78] sm:$0xf]
    %v2135 = vld [vmem:[%s5 + $0x7c] sm:$0xf]
    %v2136 = vld [vmem:[%s6] sm:$0x1]
    %v2138 = vlaneseq
    %v2139 = vshrl.u32 %v2138, 7
    %v2140 = vsub.s32 0, %v2139
    %v2141 = vrot.slane %v2136, %v2140
    %v2175 = vunpack.c.l.b16 %v2104
    %v2176 = vunpack.c.l.b16 %v2105
    %v2177 = vunpack.c.l.b16 %v2106
    %v2178 = vunpack.c.l.b16 %v2107
    %v2179 = vunpack.c.l.b16 %v2108
    %v2180 = vunpack.c.l.b16 %v2109
    %v2181 = vunpack.c.l.b16 %v2110
    %v2182 = vunpack.c.l.b16 %v2111
    %v2183 = vunpack.c.l.b16 %v2112
    %v2184 = vunpack.c.l.b16 %v2113
    %v2185 = vunpack.c.l.b16 %v2114
    %v2186 = vunpack.c.l.b16 %v2115
    %v2187 = vunpack.c.l.b16 %v2116
    %v2188 = vunpack.c.l.b16 %v2117
    %v2189 = vunpack.c.l.b16 %v2118
    %v2190 = vunpack.c.l.b16 %v2119
    %v2191 = vunpack.c.l.b16 %v2120
    %v2192 = vunpack.c.l.b16 %v2121
    %v2193 = vunpack.c.l.b16 %v2122
    %v2194 = vunpack.c.l.b16 %v2123
    %v2195 = vunpack.c.l.b16 %v2124
    %v2196 = vunpack.c.l.b16 %v2125
    %v2197 = vunpack.c.l.b16 %v2126
    %v2198 = vunpack.c.l.b16 %v2127
    %v2199 = vunpack.c.l.b16 %v2128
    %v2200 = vunpack.c.l.b16 %v2129
    %v2201 = vunpack.c.l.b16 %v2130
    %v2202 = vunpack.c.l.b16 %v2131
    %v2203 = vunpack.c.l.b16 %v2132
    %v2204 = vunpack.c.l.b16 %v2133
    %v2205 = vunpack.c.l.b16 %v2134
    %v2206 = vunpack.c.l.b16 %v2135
    %v2207 = vpack.c.b16 %v2176, %v2175
    %v2208 = vpack.c.b16 %v2178, %v2177
    %v2209 = vpack.c.b16 %v2180, %v2179
    %v2210 = vpack.c.b16 %v2182, %v2181
    %v2211 = vpack.c.b16 %v2184, %v2183
    %v2212 = vpack.c.b16 %v2186, %v2185
    %v2213 = vpack.c.b16 %v2188, %v2187
    %v2214 = vpack.c.b16 %v2190, %v2189
    %v2215 = vpack.c.b16 %v2192, %v2191
    %v2216 = vpack.c.b16 %v2194, %v2193
    %v2217 = vpack.c.b16 %v2196, %v2195
    %v2218 = vpack.c.b16 %v2198, %v2197
    %v2219 = vpack.c.b16 %v2200, %v2199
    %v2220 = vpack.c.b16 %v2202, %v2201
    %v2221 = vpack.c.b16 %v2204, %v2203
    %v2222 = vpack.c.b16 %v2206, %v2205
    %2239 = vmatprep.subr.bf16.mxu0 0
    %2240 = vmatpush1.bf16.msra.mxu0 %v2214
    %2241 = vmatprep.subr.bf16.mxu0 0
    %2242 = vmatpush1.bf16.msra.mxu0 %v2213
    %2243 = vmatprep.subr.bf16.mxu0 0
    %2244 = vmatpush1.bf16.msra.mxu0 %v2212
    %2245 = vmatprep.subr.bf16.mxu0 0
    %2246 = vmatpush1.bf16.msra.mxu0 %v2211
    %2247 = vmatprep.subr.bf16.mxu0 0
    %2248 = vmatpush1.bf16.msra.mxu0 %v2210
    %2249 = vmatprep.subr.bf16.mxu0 0
    %2250 = vmatpush1.bf16.msra.mxu0 %v2209
    %2251 = vmatprep.subr.bf16.mxu0 0
    %2252 = vmatpush1.bf16.msra.mxu0 %v2208
    %2253 = vmatprep.subr.bf16.mxu0 0
    %2254 = vmatpush1.bf16.msra.mxu0 %v2207
    %2255 = vmatprep.subr.bf16.mxu0 0
    %2256 = vmatpush2.bf16.msra.mxu0 %v2222
    %2257 = vmatprep.subr.bf16.mxu0 0
    %2258 = vmatpush2.bf16.msra.mxu0 %v2221
    %2259 = vmatprep.subr.bf16.mxu0 0
    %2260 = vmatpush2.bf16.msra.mxu0 %v2220
    %2261 = vmatprep.subr.bf16.mxu0 0
    %2262 = vmatpush2.bf16.msra.mxu0 %v2219
    %2263 = vmatprep.subr.bf16.mxu0 0
    %2264 = vmatpush2.bf16.msra.mxu0 %v2218
    %2265 = vmatprep.subr.bf16.mxu0 0
    %2266 = vmatpush2.bf16.msra.mxu0 %v2217
    %2267 = vmatprep.subr.bf16.mxu0 0
    %2268 = vmatpush2.bf16.msra.mxu0 %v2216
    %2269 = vmatprep.subr.bf16.mxu0 0
    %2270 = vmatpush2.bf16.msra.mxu0 %v2215
    %2271 = vmatprep.mubr.bf16.mxu0 %v2103
    %2272 = vmatmul.mubr.bf16.gmra.mxu0 %v2102
    %v2273 = vpop.f32.mrf.mxu0
    %v2274 = vadd.f32 %v2141, %v2273
    %v2275 = vpop.f32.mrf.mxu0
    %v2276 = vpop.f32.mrf.mxu0
    %v2277 = vpop.f32.mrf.mxu0
    %2278 = vdwg.mxu0
    %vm2279 = vcmask 80896
    %2280 = vst.msk [vmem:[#allocation7] sm:$0xff] %vm2279, %v2274
    // Predicated region
    $region38: #{tpu_custom_call.1} parent=1 // pred_check
      _
    $region39: #{tpu_custom_call.1} parent=1 // pred_check_branch
      %2282 = sbr.rel (0) target = $region41
    $region40: #{tpu_custom_call.1} parent=1 // pred_region
      %s2284 = ssub.s32 128, 128
      %2285 = vsyncadd [#allocation4], %s2284
      %s2287 = sshll.u32 [#allocation7], 4
      %s2288 = int_to_ptr.vmem [resolvable:$true] %s2287
      %2290 = dma.vmem_to_hbm [thread:$0]  %s2288, 128, %s7, [#allocation4]
    $region41: #{tpu_custom_call.1} parent=1 // pred_fallthru
      _
    // Predicated region
    $region42: #{tpu_custom_call.1} parent=1 // pred_check
      _
    $region43: #{tpu_custom_call.1} parent=1 // pred_check_branch
      %2292 = sbr.rel (0) target = $region45
    $region44: #{tpu_custom_call.1} parent=1 // pred_region
      %2293 = dma.done [#allocation4], 128
    $region45: #{tpu_custom_call.1} parent=1 // pred_fallthru
      _
    %2294 = vsyncpa [#allocation3], 1
    %2295 = vsyncpa [#allocation6], 1
    %2296 = vsyncpa [#allocation4], 1

</llo_original>
